<compile_context>
chip_gen: v7x
topology: tpu7x:2x2x1
jax: 0.10.0
libtpu: 0.0.40
codegen_flags: <defaults>
</compile_context>

<pallas_src>
import jax
import jax.numpy as jnp
from jax.experimental import pallas as pl
from jax.experimental.pallas import tpu as pltpu


# ---------------------------------------------------------------------------
# helpers
# ---------------------------------------------------------------------------

def _round_up(n, m):
    return ((n + m - 1) // m) * m


def _sublane_pack(dtype):
    # rows per packed sublane group: f32 -> 8, bf16 -> 16, int8/fp8 -> 32
    return max(8, 32 // jnp.dtype(dtype).itemsize)


def _choose_tm(batch, dtype):
    pack = _sublane_pack(dtype)
    tm_target = 256 if jnp.dtype(dtype).itemsize <= 2 else 128
    b_min = _round_up(batch, pack)
    if b_min <= tm_target:
        return b_min, b_min               # single batch tile
    return tm_target, _round_up(batch, tm_target)


def _vmem_limit(tm, kk, D, Cp, in_itemsize):
    # double-buffered input tiles + resident fc weight/bias + f32 outputs
    need = (2 * (tm * kk + kk * D) * in_itemsize        # x tile, W_enc tile
            + 2 * (D * Cp * in_itemsize + Cp * 4)       # W_fc, bias
            + 2 * (tm * D + tm * Cp) * 4)               # feats, logits
    return int(min(max(2 * need, 32 * 1024 * 1024), 56 * 1024 * 1024))


# ---------------------------------------------------------------------------
# kernels
# ---------------------------------------------------------------------------

def _conchnet_fused_kernel(x_ref, w_enc_ref, w_fc_ref, b_fc_ref,
                           logits_ref, feat_ref):
    """Small-K path: W_enc resident, grid over batch tiles only."""
    feats = jnp.dot(x_ref[...], w_enc_ref[...],
                    preferred_element_type=jnp.float32)
    feat_ref[...] = feats
    logits_ref[...] = jnp.dot(feats.astype(w_fc_ref.dtype), w_fc_ref[...],
                              preferred_element_type=jnp.float32) + b_fc_ref[...]


def _conchnet_tiled_kernel(x_ref, w_enc_ref, w_fc_ref, b_fc_ref,
                           logits_ref, feat_ref):
    """Large-K path: grid = (batch tiles, K tiles); accumulate feats in f32."""
    k = pl.program_id(1)

    @pl.when(k == 0)
    def _():
        feat_ref[...] = jnp.zeros_like(feat_ref)

    feat_ref[...] += jnp.dot(x_ref[...], w_enc_ref[...],
                             preferred_element_type=jnp.float32)

    @pl.when(k == pl.num_programs(1) - 1)
    def _():
        feats = feat_ref[...]
        logits_ref[...] = jnp.dot(feats.astype(w_fc_ref.dtype), w_fc_ref[...],
                                  preferred_element_type=jnp.float32) + b_fc_ref[...]


# ---------------------------------------------------------------------------
# load-time parameter preparation (cast / pad exactly once, not per call)
# ---------------------------------------------------------------------------

def prepare_conchnet_params(w_enc, w_fc, b_fc, *,
                            compute_dtype=jnp.bfloat16,
                            tk=None,
                            fuse_threshold_bytes=4 * 1024 * 1024):
    """Cast weights to the streaming dtype and pad them once, at load time."""
    K, D = w_enc.shape
    C = w_fc.shape[1]
    Cp = _round_up(C, 128)

    cdt = jnp.dtype(compute_dtype) if compute_dtype is not None else jnp.dtype(w_enc.dtype)
    itemsize = cdt.itemsize
    if tk is None:
        tk = 2048 if itemsize <= 2 else 1024

    tiled = (K * D * itemsize) > fuse_threshold_bytes
    Kp = _round_up(K, tk) if tiled else K

    w_enc_p = w_enc.astype(cdt)
    if Kp != K:
        w_enc_p = jnp.pad(w_enc_p, ((0, Kp - K), (0, 0)))     # once, at load time
    w_fc_p = w_fc.astype(cdt)
    if Cp != C:
        w_fc_p = jnp.pad(w_fc_p, ((0, 0), (0, Cp - C)))
    b_fc_p = b_fc.astype(jnp.float32)
    if Cp != C:
        b_fc_p = jnp.pad(b_fc_p, ((0, Cp - C),))
    b_fc_p = b_fc_p.reshape(1, Cp)

    return dict(w_enc=w_enc_p, w_fc=w_fc_p, b_fc=b_fc_p,
                K=K, Kp=Kp, D=D, C=C, Cp=Cp, tk=tk,
                tiled=tiled, compute_dtype=cdt)


# ---------------------------------------------------------------------------
# forward (mirrors ConchNet.forward(x, fea_if))
# ---------------------------------------------------------------------------

def conchnet_forward(x, params, *, fea_if=False):
    B = x.shape[0]
    cdt = params["compute_dtype"]
    K, Kp, D, C, Cp, tk = (params[k] for k in ("K", "Kp", "D", "C", "Cp", "tk"))
    w_enc, w_fc, b_fc = params["w_enc"], params["w_fc"], params["b_fc"]

    x_flat = x.reshape(B, -1).astype(cdt)
    assert x_flat.shape[1] == K, "input spatial size does not match encoder weight"

    tm, Bp = _choose_tm(B, cdt)
    if Bp != B:
        x_flat = jnp.pad(x_flat, ((0, Bp - B), (0, 0)))

    out_shape = (jax.ShapeDtypeStruct((Bp, Cp), jnp.float32),   # padded logits
                 jax.ShapeDtypeStruct((Bp, D), jnp.float32))    # features

    if not params["tiled"]:
        # ---- small K: W_enc resident, grid over batch tiles --------------
        logits_p, feats_p = pl.pallas_call(
            _conchnet_fused_kernel,
            out_shape=out_shape,
            grid_spec=pltpu.PrefetchScalarGridSpec(
                num_scalar_prefetch=0,
                grid=(Bp // tm,),
                in_specs=[
                    pl.BlockSpec((tm, K), lambda m: (m, 0)),    # x batch tile
                    pl.BlockSpec((K, D), lambda m: (0, 0)),     # W_enc (resident)
                    pl.BlockSpec((D, Cp), lambda m: (0, 0)),    # W_fc (padded)
                    pl.BlockSpec((1, Cp), lambda m: (0, 0)),    # b_fc (padded)
                ],
                out_specs=[
                    pl.BlockSpec((tm, Cp), lambda m: (m, 0)),   # logits (lane-dense)
                    pl.BlockSpec((tm, D), lambda m: (m, 0)),    # features
                ],
            ),
            compiler_params=pltpu.CompilerParams(
                dimension_semantics=("parallel",),
                vmem_limit_bytes=_vmem_limit(tm, K, D, Cp, cdt.itemsize)),
        )(x_flat, w_enc, w_fc, b_fc)
    else:
        # ---- large K: (batch tiles, K tiles), feats accumulate in f32 ----
        if Kp != K:
            # K tail: activations only (weight was pre-padded once at load time)
            x_flat = jnp.pad(x_flat, ((0, 0), (0, Kp - K)))
        logits_p, feats_p = pl.pallas_call(
            _conchnet_tiled_kernel,
            out_shape=out_shape,
            grid_spec=pltpu.PrefetchScalarGridSpec(
                num_scalar_prefetch=0,
                grid=(Bp // tm, Kp // tk),
                in_specs=[
                    pl.BlockSpec((tm, tk), lambda m, k: (m, k)),  # x tile
                    pl.BlockSpec((tk, D), lambda m, k: (k, 0)),   # W_enc K-tile
                    pl.BlockSpec((D, Cp), lambda m, k: (0, 0)),   # W_fc (resident)
                    pl.BlockSpec((1, Cp), lambda m, k: (0, 0)),   # b_fc (resident)
                ],
                out_specs=[
                    pl.BlockSpec((tm, Cp), lambda m, k: (m, 0)),  # logits
                    pl.BlockSpec((tm, D), lambda m, k: (m, 0)),   # features (f32 acc)
                ],
            ),
            compiler_params=pltpu.CompilerParams(
                dimension_semantics=("parallel", "arbitrary"),
                vmem_limit_bytes=_vmem_limit(tm, tk, D, Cp, cdt.itemsize)),
        )(x_flat, w_enc, w_fc, b_fc)

    logits = logits_p[:B, :C]
    feats = feats_p[:B, :]
    if fea_if:
        return logits, feats
    return logits


# ---------------------------------------------------------------------------
# demo / correctness check
# ---------------------------------------------------------------------------

if __name__ == "__main__":
    # Small shapes consistent with the forward: NCHW image -> 512-d features
    # -> num_classes logits.
    B, Cimg, H, W = 2, 3, 16, 16
    D = 512                 # ConchNet fc in_features
    NUM_CLASSES = 10

    key = jax.random.PRNGKey(0)
    kx, kenc, kfcw, kfcb = jax.random.split(key, 4)

    x = jax.random.normal(kx, (B, Cimg, H, W), dtype=jnp.float32)

    K = Cimg * H * W        # 768
    # stand-in encoder weight (deterministic)
    w_enc = jax.random.normal(kenc, (K, D), dtype=jnp.float32) * (1.0 / jnp.sqrt(K))
    # fc: nn.Linear(512, num_classes)-style init (uniform +/- 1/sqrt(512))
    bound = 1.0 / jnp.sqrt(jnp.float32(D))
    w_fc = jax.random.uniform(kfcw, (D, NUM_CLASSES), dtype=jnp.float32,
                              minval=-bound, maxval=bound)
    b_fc = jax.random.uniform(kfcb, (NUM_CLASSES,), dtype=jnp.float32,
                              minval=-bound, maxval=bound)

    # bf16-streamed reference (matches the kernel's compute_dtype / f32 accumulation)
    x_bf = x.reshape(B, -1).astype(jnp.bfloat16)
    feats_ref = jnp.dot(x_bf, w_enc.astype(jnp.bfloat16),
                        preferred_element_type=jnp.float32)
    logits_ref = jnp.dot(feats_ref.astype(jnp.bfloat16), w_fc.astype(jnp.bfloat16),
                         preferred_element_type=jnp.float32) + b_fc

    # ---- fused (small-K) path: weights prepared once at load time ----------
    params_fused = prepare_conchnet_params(w_enc, w_fc, b_fc)
    logits, feats = conchnet_forward(x, params_fused, fea_if=True)
    jax.block_until_ready((logits, feats))
    assert logits.shape == (B, NUM_CLASSES)
    assert feats.shape == (B, D)
    assert jnp.allclose(logits, logits_ref, atol=1e-2, rtol=1e-2)
    assert jnp.allclose(feats, feats_ref, atol=1e-2, rtol=1e-2)

    # logits-only path (fea_if=False)
    logits_only = conchnet_forward(x, params_fused, fea_if=False)
    jax.block_until_ready(logits_only)
    assert jnp.allclose(logits_only, logits_ref, atol=1e-2, rtol=1e-2)

    # ---- K-tiled path (forced via tiny threshold; tk=256 divides K=768) ----
    params_tiled = prepare_conchnet_params(w_enc, w_fc, b_fc,
                                           tk=256, fuse_threshold_bytes=0)
    logits_t, feats_t = conchnet_forward(x, params_tiled, fea_if=True)
    jax.block_until_ready((logits_t, feats_t))
    assert jnp.allclose(logits_t, logits_ref, atol=1e-2, rtol=1e-2)
    assert jnp.allclose(feats_t, feats_ref, atol=1e-2, rtol=1e-2)
    assert jnp.allclose(logits_t, logits, atol=1e-3, rtol=1e-3)

    print("KERNEL_OK")
</pallas_src>

<mosaic_0001>
module attributes {stable_mosaic.version = 11 : i64} {
  func.func @_conchnet_fused_kernel(%arg0: i32, %arg1: memref<16x768xbf16, #tpu.memory_space<vmem>>, %arg2: memref<768x512xbf16, #tpu.memory_space<vmem>>, %arg3: memref<512x128xbf16, #tpu.memory_space<vmem>>, %arg4: memref<1x128xf32, #tpu.memory_space<vmem>>, %arg5: memref<16x128xf32, #tpu.memory_space<vmem>>, %arg6: memref<16x512xf32, #tpu.memory_space<vmem>>) attributes {dimension_semantics = [#tpu.dimension_semantics<parallel>], iteration_bounds = array<i64: 1>, scalar_prefetch = 0 : i64, scratch_operands = 0 : i64, tpu.core_type = #tpu.core_type<tc>, window_params = [{transform_indices = @transform_0, window_bounds = array<i64: 16, 768>}, {pipeline_mode = #tpu.pipeline_mode<synchronous>, transform_indices = @transform_1, window_bounds = array<i64: 768, 512>}, {pipeline_mode = #tpu.pipeline_mode<synchronous>, transform_indices = @transform_2, window_bounds = array<i64: 512, 128>}, {pipeline_mode = #tpu.pipeline_mode<synchronous>, transform_indices = @transform_3, window_bounds = array<i64: 1, 128>}, {transform_indices = @transform_4, window_bounds = array<i64: 16, 128>}, {transform_indices = @transform_5, window_bounds = array<i64: 16, 512>}]} {
    %c0 = arith.constant 0 : index
    %c0_0 = arith.constant 0 : index
    %0 = vector.load %arg1[%c0, %c0_0] : memref<16x768xbf16, #tpu.memory_space<vmem>>, vector<16x768xbf16>
    %c0_1 = arith.constant 0 : index
    %c0_2 = arith.constant 0 : index
    %1 = vector.load %arg2[%c0_1, %c0_2] : memref<768x512xbf16, #tpu.memory_space<vmem>>, vector<768x512xbf16>
    %cst = arith.constant dense<0.000000e+00> : vector<16x512xf32>
    %2 = tpu.matmul %0, %1, %cst {dimension_numbers = #tpu.dot_dimension_numbers<[1], [0], [0], [1], [0, 0, 1, 1], [], []>} : vector<16x768xbf16>, vector<768x512xbf16>, vector<16x512xf32> -> vector<16x512xf32>
    %c0_3 = arith.constant 0 : index
    %c0_4 = arith.constant 0 : index
    %3 = vector.load %arg6[%c0_3, %c0_4] : memref<16x512xf32, #tpu.memory_space<vmem>>, vector<16x512xf32>
    tpu.vector_store %arg6[%c0_3, %c0_4], %2 {strides = array<i32>} : memref<16x512xf32, #tpu.memory_space<vmem>>, vector<16x512xf32>,
    %4 = arith.truncf %2 : vector<16x512xf32> to vector<16x512xbf16>
    %c0_5 = arith.constant 0 : index
    %c0_6 = arith.constant 0 : index
    %5 = vector.load %arg3[%c0_5, %c0_6] : memref<512x128xbf16, #tpu.memory_space<vmem>>, vector<512x128xbf16>
    %cst_7 = arith.constant dense<0.000000e+00> : vector<16x128xf32>
    %6 = tpu.matmul %4, %5, %cst_7 {dimension_numbers = #tpu.dot_dimension_numbers<[1], [0], [0], [1], [0, 0, 1, 1], [], []>} : vector<16x512xbf16>, vector<512x128xbf16>, vector<16x128xf32> -> vector<16x128xf32>
    %c0_8 = arith.constant 0 : index
    %c0_9 = arith.constant 0 : index
    %7 = vector.load %arg4[%c0_8, %c0_9] : memref<1x128xf32, #tpu.memory_space<vmem>>, vector<1x128xf32>
    %8 = vector.broadcast %7 : vector<1x128xf32> to vector<16x128xf32>
    %9 = arith.addf %6, %8 : vector<16x128xf32>
    %c0_10 = arith.constant 0 : index
    %c0_11 = arith.constant 0 : index
    %10 = vector.load %arg5[%c0_10, %c0_11] : memref<16x128xf32, #tpu.memory_space<vmem>>, vector<16x128xf32>
    tpu.vector_store %arg5[%c0_10, %c0_11], %9 {strides = array<i32>} : memref<16x128xf32, #tpu.memory_space<vmem>>, vector<16x128xf32>,
    return
  }
  func.func @transform_0(%arg0: i32) -> (i32, i32) {
    %c0_i32 = arith.constant 0 : i32
    %c0_i32_0 = arith.constant 0 : i32
    return %arg0, %c0_i32 : i32, i32
  }
  func.func @transform_1(%arg0: i32) -> (i32, i32) {
    %c0_i32 = arith.constant 0 : i32
    %c0_i32_0 = arith.constant 0 : i32
    %c0_i32_1 = arith.constant 0 : i32
    return %c0_i32, %c0_i32_0 : i32, i32
  }
  func.func @transform_2(%arg0: i32) -> (i32, i32) {
    %c0_i32 = arith.constant 0 : i32
    %c0_i32_0 = arith.constant 0 : i32
    %c0_i32_1 = arith.constant 0 : i32
    return %c0_i32, %c0_i32_0 : i32, i32
  }
  func.func @transform_3(%arg0: i32) -> (i32, i32) {
    %c0_i32 = arith.constant 0 : i32
    %c0_i32_0 = arith.constant 0 : i32
    %c0_i32_1 = arith.constant 0 : i32
    return %c0_i32, %c0_i32_0 : i32, i32
  }
  func.func @transform_4(%arg0: i32) -> (i32, i32) {
    %c0_i32 = arith.constant 0 : i32
    %c0_i32_0 = arith.constant 0 : i32
    return %arg0, %c0_i32 : i32, i32
  }
  func.func @transform_5(%arg0: i32) -> (i32, i32) {
    %c0_i32 = arith.constant 0 : i32
    %c0_i32_0 = arith.constant 0 : i32
    return %arg0, %c0_i32 : i32, i32
  }
}

</mosaic_0001>

<llo_original>
// kernel: tpu_custom_call.1
$region0: #{tpu_custom_call.1}
  #allocation0 [shape = 'u32[]', space=smem, size = 0x4, offset = 0x4, fixed_abs, tag = 'smem constant byte address 0x4 - core index']
  #allocation1 [shape = 'u32[144,128]{1,0:T(1,128)}', space=vmem, size = 0x12000, scoped, tag = 'internal scratch']
  %s0 = inlined_call_operand.hbm [shape: bf16[16,768], index: 0, kind: input, shape index: {}]
  %s1 = inlined_call_operand.hbm [shape: bf16[768,512], index: 1, kind: input, shape index: {}]
  %s2 = inlined_call_operand.hbm [shape: bf16[512,128], index: 2, kind: input, shape index: {}]
  %s3 = inlined_call_operand.vmem [shape: f32[1,128], index: 3, kind: input, shape index: {}]
  %s4 = inlined_call_operand.hbm [shape: f32[16,128], index: 4, kind: output, shape index: {0}]
  %s5 = inlined_call_operand.hbm [shape: f32[16,512], index: 5, kind: output, shape index: {1}]
  %6 = xla_tuple %s4, %s5
  %s7 = sld [smem:[#allocation0]]
  $region46: #{tpu_custom_call.1} parent=0
    _
  %s9 = ssub.s32 1, %s7
  %s10 = scalar_select 0, %s9, %s7
  $region1: #{tpu_custom_call.1} parent=0
    #allocation2 [shape = 'u8[24576]{0}', space=vmem, size = 0x6000, scoped, tag = 'input window, operand 0, single buffered']
    #allocation3 [shape = 's32[1]{0}', space=sflag, size = 0x4, scoped, tag = 'scoped memory for tpu_custom_call.1']
    #allocation4 [shape = 's32[1]{0}', space=sflag, size = 0x4, scoped, tag = 'scoped memory for tpu_custom_call.1']
    #allocation5 [shape = 'u8[786432]{0}', space=vmem, size = 0xc0000, scoped, tag = 'input window, operand 1, single buffered']
    #allocation6 [shape = 's32[1]{0}', space=sflag, size = 0x4, scoped, tag = 'scoped memory for tpu_custom_call.1']
    #allocation7 [shape = 'u8[131072]{0}', space=vmem, size = 0x20000, scoped, tag = 'input window, operand 2, single buffered']
    #allocation8 [shape = 'u8[8192]{0}', space=vmem, size = 0x2000, scoped, tag = 'output window, operand 0, single buffered']
    #allocation9 [shape = 'u8[32768]{0}', space=vmem, size = 0x8000, scoped, tag = 'output window, operand 1, single buffered']
    #allocation10 [shape = 's32[1]{0}', space=sflag, size = 0x4, scoped, tag = 'scoped memory for tpu_custom_call.1']
    %11 = vsyncpa [#allocation3], 0
    %12 = vsyncpa [#allocation6], 0
    %13 = vsyncpa [#allocation4], 0
    %14 = vsyncpa [#allocation10], 0
    // Predicated region
    $region2: #{tpu_custom_call.1} parent=1 // pred_check
      _
    $region3: #{tpu_custom_call.1} parent=1 // pred_check_branch
      %16 = sbr.rel (0) target = $region5
    $region4: #{tpu_custom_call.1} parent=1 // pred_region
      %s18 = ssub.s32 768, 768
      %19 = vsyncadd [#allocation3], %s18
      %s20 = sshll.u32 [#allocation2], 4
      %s21 = int_to_ptr.vmem [resolvable:$true] %s20
      %26 = dma.hbm_to_vmem [thread:$0]  %s0, 768, %s21, [#allocation3], 384, 384, 24
    $region5: #{tpu_custom_call.1} parent=1 // pred_fallthru
      _
    // Predicated region
    $region6: #{tpu_custom_call.1} parent=1 // pred_check
      _
    $region7: #{tpu_custom_call.1} parent=1 // pred_check_branch
      %28 = sbr.rel (0) target = $region9
    $region8: #{tpu_custom_call.1} parent=1 // pred_region
      %s30 = ssub.s32 24576, 24576
      %31 = vsyncadd [#allocation6], %s30
      %s32 = sshll.u32 [#allocation5], 4
      %s33 = int_to_ptr.vmem [resolvable:$true] %s32
      %38 = dma.hbm_to_vmem [thread:$0]  %s1, 24576, %s33, [#allocation6], 256, 256, 16
    $region9: #{tpu_custom_call.1} parent=1 // pred_fallthru
      _
    // Predicated region
    $region10: #{tpu_custom_call.1} parent=1 // pred_check
      _
    $region11: #{tpu_custom_call.1} parent=1 // pred_check_branch
      %40 = sbr.rel (0) target = $region13
    $region12: #{tpu_custom_call.1} parent=1 // pred_region
      %s42 = ssub.s32 4096, 4096
      %43 = vsyncadd [#allocation6], %s42
      %s44 = sshll.u32 [#allocation7], 4
      %s45 = int_to_ptr.vmem [resolvable:$true] %s44
      %50 = dma.hbm_to_vmem [thread:$0]  %s2, 4096, %s45, [#allocation6], 64, 64, 4
    $region13: #{tpu_custom_call.1} parent=1 // pred_fallthru
      _
    // Predicated region
    $region14: #{tpu_custom_call.1} parent=1 // pred_check
      _
    $region15: #{tpu_custom_call.1} parent=1 // pred_check_branch
      %52 = sbr.rel (0) target = $region17
    $region16: #{tpu_custom_call.1} parent=1 // pred_region
      _
    $region17: #{tpu_custom_call.1} parent=1 // pred_fallthru
      _
    // Predicated region
    $region18: #{tpu_custom_call.1} parent=1 // pred_check
      _
    $region19: #{tpu_custom_call.1} parent=1 // pred_check_branch
      %54 = sbr.rel (0) target = $region21
    $region20: #{tpu_custom_call.1} parent=1 // pred_region
      %55 = dma.done [#allocation3], 768
    $region21: #{tpu_custom_call.1} parent=1 // pred_fallthru
      _
    // Predicated region
    $region22: #{tpu_custom_call.1} parent=1 // pred_check
      _
    $region23: #{tpu_custom_call.1} parent=1 // pred_check_branch
      %57 = sbr.rel (0) target = $region25
    $region24: #{tpu_custom_call.1} parent=1 // pred_region
      %58 = dma.done [#allocation6], 24576
    $region25: #{tpu_custom_call.1} parent=1 // pred_fallthru
      _
    // Predicated region
    $region26: #{tpu_custom_call.1} parent=1 // pred_check
      _
    $region27: #{tpu_custom_call.1} parent=1 // pred_check_branch
      %60 = sbr.rel (0) target = $region29
    $region28: #{tpu_custom_call.1} parent=1 // pred_region
      %61 = dma.done [#allocation6], 4096
    $region29: #{tpu_custom_call.1} parent=1 // pred_fallthru
      _
    %v63 = vld [vmem:[#allocation2] sm:$0xff]
    %v64 = vld [vmem:[#allocation2 + $0x8] sm:$0xff]
    %v65 = vld [vmem:[#allocation2 + $0x10] sm:$0xff]
    %v66 = vld [vmem:[#allocation2 + $0x18] sm:$0xff]
    %v67 = vld [vmem:[#allocation2 + $0x20] sm:$0xff]
    %v68 = vld [vmem:[#allocation2 + $0x28] sm:$0xff]
    %v69 = vld [vmem:[#allocation5] sm:$0xff]
    %v70 = vld [vmem:[#allocation5 + $0x8] sm:$0xff]
    %v71 = vld [vmem:[#allocation5 + $0x10] sm:$0xff]
    %v72 = vld [vmem:[#allocation5 + $0x18] sm:$0xff]
    %v73 = vld [vmem:[#allocation5 + $0x20] sm:$0xff]
    %v74 = vld [vmem:[#allocation5 + $0x28] sm:$0xff]
    %v75 = vld [vmem:[#allocation5 + $0x30] sm:$0xff]
    %v76 = vld [vmem:[#allocation5 + $0x38] sm:$0xff]
    %v77 = vld [vmem:[#allocation5 + $0x40] sm:$0xff]
    %v78 = vld [vmem:[#allocation5 + $0x48] sm:$0xff]
    %v79 = vld [vmem:[#allocation5 + $0x50] sm:$0xff]
    %v80 = vld [vmem:[#allocation5 + $0x58] sm:$0xff]
    %v81 = vld [vmem:[#allocation5 + $0x60] sm:$0xff]
    %v82 = vld [vmem:[#allocation5 + $0x68] sm:$0xff]
    %v83 = vld [vmem:[#allocation5 + $0x70] sm:$0xff]
    %v84 = vld [vmem:[#allocation5 + $0x78] sm:$0xff]
    %v85 = vld [vmem:[#allocation5 + $0x80] sm:$0xff]
    %v86 = vld [vmem:[#allocation5 + $0x88] sm:$0xff]
    %v87 = vld [vmem:[#allocation5 + $0x90] sm:$0xff]
    %v88 = vld [vmem:[#allocation5 + $0x98] sm:$0xff]
    %v89 = vld [vmem:[#allocation5 + $0xa0] sm:$0xff]
    %v90 = vld [vmem:[#allocation5 + $0xa8] sm:$0xff]
    %v91 = vld [vmem:[#allocation5 + $0xb0] sm:$0xff]
    %v92 = vld [vmem:[#allocation5 + $0xb8] sm:$0xff]
    %v93 = vld [vmem:[#allocation5 + $0xc0] sm:$0xff]
    %v94 = vld [vmem:[#allocation5 + $0xc8] sm:$0xff]
    %v95 = vld [vmem:[#allocation5 + $0xd0] sm:$0xff]
    %v96 = vld [vmem:[#allocation5 + $0xd8] sm:$0xff]
    %v97 = vld [vmem:[#allocation5 + $0xe0] sm:$0xff]
    %v98 = vld [vmem:[#allocation5 + $0xe8] sm:$0xff]
    %v99 = vld [vmem:[#allocation5 + $0xf0] sm:$0xff]
    %v100 = vld [vmem:[#allocation5 + $0xf8] sm:$0xff]
    %v101 = vld [vmem:[#allocation5 + $0x100] sm:$0xff]
    %v102 = vld [vmem:[#allocation5 + $0x108] sm:$0xff]
    %v103 = vld [vmem:[#allocation5 + $0x110] sm:$0xff]
    %v104 = vld [vmem:[#allocation5 + $0x118] sm:$0xff]
    %v105 = vld [vmem:[#allocation5 + $0x120] sm:$0xff]
    %v106 = vld [vmem:[#allocation5 + $0x128] sm:$0xff]
    %v107 = vld [vmem:[#allocation5 + $0x130] sm:$0xff]
    %v108 = vld [vmem:[#allocation5 + $0x138] sm:$0xff]
    %v109 = vld [vmem:[#allocation5 + $0x140] sm:$0xff]
    %v110 = vld [vmem:[#allocation5 + $0x148] sm:$0xff]
    %v111 = vld [vmem:[#allocation5 + $0x150] sm:$0xff]
    %v112 = vld [vmem:[#allocation5 + $0x158] sm:$0xff]
    %v113 = vld [vmem:[#allocation5 + $0x160] sm:$0xff]
    %v114 = vld [vmem:[#allocation5 + $0x168] sm:$0xff]
    %v115 = vld [vmem:[#allocation5 + $0x170] sm:$0xff]
    %v116 = vld [vmem:[#allocation5 + $0x178] sm:$0xff]
    %v117 = vld [vmem:[#allocation5 + $0x180] sm:$0xff]
    %v118 = vld [vmem:[#allocation5 + $0x188] sm:$0xff]
    %v119 = vld [vmem:[#allocation5 + $0x190] sm:$0xff]
    %v120 = vld [vmem:[#allocation5 + $0x198] sm:$0xff]
    %v121 = vld [vmem:[#allocation5 + $0x1a0] sm:$0xff]
    %v122 = vld [vmem:[#allocation5 + $0x1a8] sm:$0xff]
    %v123 = vld [vmem:[#allocation5 + $0x1b0] sm:$0xff]
    %v124 = vld [vmem:[#allocation5 + $0x1b8] sm:$0xff]
    %v125 = vld [vmem:[#allocation5 + $0x1c0] sm:$0xff]
    %v126 = vld [vmem:[#allocation5 + $0x1c8] sm:$0xff]
    %v127 = vld [vmem:[#allocation5 + $0x1d0] sm:$0xff]
    %v128 = vld [vmem:[#allocation5 + $0x1d8] sm:$0xff]
    %v129 = vld [vmem:[#allocation5 + $0x1e0] sm:$0xff]
    %v130 = vld [vmem:[#allocation5 + $0x1e8] sm:$0xff]
    %v131 = vld [vmem:[#allocation5 + $0x1f0] sm:$0xff]
    %v132 = vld [vmem:[#allocation5 + $0x1f8] sm:$0xff]
    %v133 = vld [vmem:[#allocation5 + $0x200] sm:$0xff]
    %v134 = vld [vmem:[#allocation5 + $0x208] sm:$0xff]
    %v135 = vld [vmem:[#allocation5 + $0x210] sm:$0xff]
    %v136 = vld [vmem:[#allocation5 + $0x218] sm:$0xff]
    %v137 = vld [vmem:[#allocation5 + $0x220] sm:$0xff]
    %v138 = vld [vmem:[#allocation5 + $0x228] sm:$0xff]
    %v139 = vld [vmem:[#allocation5 + $0x230] sm:$0xff]
    %v140 = vld [vmem:[#allocation5 + $0x238] sm:$0xff]
    %v141 = vld [vmem:[#allocation5 + $0x240] sm:$0xff]
    %v142 = vld [vmem:[#allocation5 + $0x248] sm:$0xff]
    %v143 = vld [vmem:[#allocation5 + $0x250] sm:$0xff]
    %v144 = vld [vmem:[#allocation5 + $0x258] sm:$0xff]
    %v145 = vld [vmem:[#allocation5 + $0x260] sm:$0xff]
    %v146 = vld [vmem:[#allocation5 + $0x268] sm:$0xff]
    %v147 = vld [vmem:[#allocation5 + $0x270] sm:$0xff]
    %v148 = vld [vmem:[#allocation5 + $0x278] sm:$0xff]
    %v149 = vld [vmem:[#allocation5 + $0x280] sm:$0xff]
    %v150 = vld [vmem:[#allocation5 + $0x288] sm:$0xff]
    %v151 = vld [vmem:[#allocation5 + $0x290] sm:$0xff]
    %v152 = vld [vmem:[#allocation5 + $0x298] sm:$0xff]
    %v153 = vld [vmem:[#allocation5 + $0x2a0] sm:$0xff]
    %v154 = vld [vmem:[#allocation5 + $0x2a8] sm:$0xff]
    %v155 = vld [vmem:[#allocation5 + $0x2b0] sm:$0xff]
    %v156 = vld [vmem:[#allocation5 + $0x2b8] sm:$0xff]
    %v157 = vld [vmem:[#allocation5 + $0x2c0] sm:$0xff]
    %v158 = vld [vmem:[#allocation5 + $0x2c8] sm:$0xff]
    %v159 = vld [vmem:[#allocation5 + $0x2d0] sm:$0xff]
    %v160 = vld [vmem:[#allocation5 + $0x2d8] sm:$0xff]
    %v161 = vld [vmem:[#allocation5 + $0x2e0] sm:$0xff]
    %v162 = vld [vmem:[#allocation5 + $0x2e8] sm:$0xff]
    %v163 = vld [vmem:[#allocation5 + $0x2f0] sm:$0xff]
    %v164 = vld [vmem:[#allocation5 + $0x2f8] sm:$0xff]
    %v165 = vld [vmem:[#allocation5 + $0x300] sm:$0xff]
    %v166 = vld [vmem:[#allocation5 + $0x308] sm:$0xff]
    %v167 = vld [vmem:[#allocation5 + $0x310] sm:$0xff]
    %v168 = vld [vmem:[#allocation5 + $0x318] sm:$0xff]
    %v169 = vld [vmem:[#allocation5 + $0x320] sm:$0xff]
    %v170 = vld [vmem:[#allocation5 + $0x328] sm:$0xff]
    %v171 = vld [vmem:[#allocation5 + $0x330] sm:$0xff]
    %v172 = vld [vmem:[#allocation5 + $0x338] sm:$0xff]
    %v173 = vld [vmem:[#allocation5 + $0x340] sm:$0xff]
    %v174 = vld [vmem:[#allocation5 + $0x348] sm:$0xff]
    %v175 = vld [vmem:[#allocation5 + $0x350] sm:$0xff]
    %v176 = vld [vmem:[#allocation5 + $0x358] sm:$0xff]
    %v177 = vld [vmem:[#allocation5 + $0x360] sm:$0xff]
    %v178 = vld [vmem:[#allocation5 + $0x368] sm:$0xff]
    %v179 = vld [vmem:[#allocation5 + $0x370] sm:$0xff]
    %v180 = vld [vmem:[#allocation5 + $0x378] sm:$0xff]
    %v181 = vld [vmem:[#allocation5 + $0x380] sm:$0xff]
    %v182 = vld [vmem:[#allocation5 + $0x388] sm:$0xff]
    %v183 = vld [vmem:[#allocation5 + $0x390] sm:$0xff]
    %v184 = vld [vmem:[#allocation5 + $0x398] sm:$0xff]
    %v185 = vld [vmem:[#allocation5 + $0x3a0] sm:$0xff]
    %v186 = vld [vmem:[#allocation5 + $0x3a8] sm:$0xff]
    %v187 = vld [vmem:[#allocation5 + $0x3b0] sm:$0xff]
    %v188 = vld [vmem:[#allocation5 + $0x3b8] sm:$0xff]
    %v189 = vld [vmem:[#allocation5 + $0x3c0] sm:$0xff]
    %v190 = vld [vmem:[#allocation5 + $0x3c8] sm:$0xff]
    %v191 = vld [vmem:[#allocation5 + $0x3d0] sm:$0xff]
    %v192 = vld [vmem:[#allocation5 + $0x3d8] sm:$0xff]
    %v193 = vld [vmem:[#allocation5 + $0x3e0] sm:$0xff]
    %v194 = vld [vmem:[#allocation5 + $0x3e8] sm:$0xff]
    %v195 = vld [vmem:[#allocation5 + $0x3f0] sm:$0xff]
    %v196 = vld [vmem:[#allocation5 + $0x3f8] sm:$0xff]
    %v197 = vld [vmem:[#allocation5 + $0x400] sm:$0xff]
    %v198 = vld [vmem:[#allocation5 + $0x408] sm:$0xff]
    %v199 = vld [vmem:[#allocation5 + $0x410] sm:$0xff]
    %v200 = vld [vmem:[#allocation5 + $0x418] sm:$0xff]
    %v201 = vld [vmem:[#allocation5 + $0x420] sm:$0xff]
    %v202 = vld [vmem:[#allocation5 + $0x428] sm:$0xff]
    %v203 = vld [vmem:[#allocation5 + $0x430] sm:$0xff]
    %v204 = vld [vmem:[#allocation5 + $0x438] sm:$0xff]
    %v205 = vld [vmem:[#allocation5 + $0x440] sm:$0xff]
    %v206 = vld [vmem:[#allocation5 + $0x448] sm:$0xff]
    %v207 = vld [vmem:[#allocation5 + $0x450] sm:$0xff]
    %v208 = vld [vmem:[#allocation5 + $0x458] sm:$0xff]
    %v209 = vld [vmem:[#allocation5 + $0x460] sm:$0xff]
    %v210 = vld [vmem:[#allocation5 + $0x468] sm:$0xff]
    %v211 = vld [vmem:[#allocation5 + $0x470] sm:$0xff]
    %v212 = vld [vmem:[#allocation5 + $0x478] sm:$0xff]
    %v213 = vld [vmem:[#allocation5 + $0x480] sm:$0xff]
    %v214 = vld [vmem:[#allocation5 + $0x488] sm:$0xff]
    %v215 = vld [vmem:[#allocation5 + $0x490] sm:$0xff]
    %v216 = vld [vmem:[#allocation5 + $0x498] sm:$0xff]
    %v217 = vld [vmem:[#allocation5 + $0x4a0] sm:$0xff]
    %v218 = vld [vmem:[#allocation5 + $0x4a8] sm:$0xff]
    %v219 = vld [vmem:[#allocation5 + $0x4b0] sm:$0xff]
    %v220 = vld [vmem:[#allocation5 + $0x4b8] sm:$0xff]
    %v221 = vld [vmem:[#allocation5 + $0x4c0] sm:$0xff]
    %v222 = vld [vmem:[#allocation5 + $0x4c8] sm:$0xff]
    %v223 = vld [vmem:[#allocation5 + $0x4d0] sm:$0xff]
    %v224 = vld [vmem:[#allocation5 + $0x4d8] sm:$0xff]
    %v225 = vld [vmem:[#allocation5 + $0x4e0] sm:$0xff]
    %v226 = vld [vmem:[#allocation5 + $0x4e8] sm:$0xff]
    %v227 = vld [vmem:[#allocation5 + $0x4f0] sm:$0xff]
    %v228 = vld [vmem:[#allocation5 + $0x4f8] sm:$0xff]
    %v229 = vld [vmem:[#allocation5 + $0x500] sm:$0xff]
    %v230 = vld [vmem:[#allocation5 + $0x508] sm:$0xff]
    %v231 = vld [vmem:[#allocation5 + $0x510] sm:$0xff]
    %v232 = vld [vmem:[#allocation5 + $0x518] sm:$0xff]
    %v233 = vld [vmem:[#allocation5 + $0x520] sm:$0xff]
    %v234 = vld [vmem:[#allocation5 + $0x528] sm:$0xff]
    %v235 = vld [vmem:[#allocation5 + $0x530] sm:$0xff]
    %v236 = vld [vmem:[#allocation5 + $0x538] sm:$0xff]
    %v237 = vld [vmem:[#allocation5 + $0x540] sm:$0xff]
    %v238 = vld [vmem:[#allocation5 + $0x548] sm:$0xff]
    %v239 = vld [vmem:[#allocation5 + $0x550] sm:$0xff]
    %v240 = vld [vmem:[#allocation5 + $0x558] sm:$0xff]
    %v241 = vld [vmem:[#allocation5 + $0x560] sm:$0xff]
    %v242 = vld [vmem:[#allocation5 + $0x568] sm:$0xff]
    %v243 = vld [vmem:[#allocation5 + $0x570] sm:$0xff]
    %v244 = vld [vmem:[#allocation5 + $0x578] sm:$0xff]
    %v245 = vld [vmem:[#allocation5 + $0x580] sm:$0xff]
    %v246 = vld [vmem:[#allocation5 + $0x588] sm:$0xff]
    %v247 = vld [vmem:[#allocation5 + $0x590] sm:$0xff]
    %v248 = vld [vmem:[#allocation5 + $0x598] sm:$0xff]
    %v249 = vld [vmem:[#allocation5 + $0x5a0] sm:$0xff]
    %v250 = vld [vmem:[#allocation5 + $0x5a8] sm:$0xff]
    %v251 = vld [vmem:[#allocation5 + $0x5b0] sm:$0xff]
    %v252 = vld [vmem:[#allocation5 + $0x5b8] sm:$0xff]
    %v253 = vld [vmem:[#allocation5 + $0x5c0] sm:$0xff]
    %v254 = vld [vmem:[#allocation5 + $0x5c8] sm:$0xff]
    %v255 = vld [vmem:[#allocation5 + $0x5d0] sm:$0xff]
    %v256 = vld [vmem:[#allocation5 + $0x5d8] sm:$0xff]
    %v257 = vld [vmem:[#allocation5 + $0x5e0] sm:$0xff]
    %v258 = vld [vmem:[#allocation5 + $0x5e8] sm:$0xff]
    %v259 = vld [vmem:[#allocation5 + $0x5f0] sm:$0xff]
    %v260 = vld [vmem:[#allocation5 + $0x5f8] sm:$0xff]
    %v267 = vunpack.c.l.b16 %v63
    %v268 = vunpack.c.h.b16 %v63
    %v269 = vunpack.c.l.b16 %v64
    %v270 = vunpack.c.h.b16 %v64
    %v271 = vunpack.c.l.b16 %v65
    %v272 = vunpack.c.h.b16 %v65
    %v273 = vunpack.c.l.b16 %v66
    %v274 = vunpack.c.h.b16 %v66
    %v275 = vunpack.c.l.b16 %v67
    %v276 = vunpack.c.h.b16 %v67
    %v277 = vunpack.c.l.b16 %v68
    %v278 = vunpack.c.h.b16 %v68
    %v279 = vpack.c.b16 %v273, %v267
    %v280 = vpack.c.b16 %v274, %v268
    %v281 = vpack.c.b16 %v275, %v269
    %v282 = vpack.c.b16 %v276, %v270
    %v283 = vpack.c.b16 %v277, %v271
    %v284 = vpack.c.b16 %v278, %v272
    %v483 = vunpack.c.l.b16 %v69
    %v484 = vunpack.c.h.b16 %v69
    %v485 = vunpack.c.l.b16 %v70
    %v486 = vunpack.c.h.b16 %v70
    %v487 = vunpack.c.l.b16 %v71
    %v488 = vunpack.c.h.b16 %v71
    %v489 = vunpack.c.l.b16 %v72
    %v490 = vunpack.c.h.b16 %v72
    %v491 = vunpack.c.l.b16 %v73
    %v492 = vunpack.c.h.b16 %v73
    %v493 = vunpack.c.l.b16 %v74
    %v494 = vunpack.c.h.b16 %v74
    %v495 = vunpack.c.l.b16 %v75
    %v496 = vunpack.c.h.b16 %v75
    %v497 = vunpack.c.l.b16 %v76
    %v498 = vunpack.c.h.b16 %v76
    %v499 = vunpack.c.l.b16 %v77
    %v500 = vunpack.c.h.b16 %v77
    %v501 = vunpack.c.l.b16 %v78
    %v502 = vunpack.c.h.b16 %v78
    %v503 = vunpack.c.l.b16 %v79
    %v504 = vunpack.c.h.b16 %v79
    %v505 = vunpack.c.l.b16 %v80
    %v506 = vunpack.c.h.b16 %v80
    %v507 = vunpack.c.l.b16 %v81
    %v508 = vunpack.c.h.b16 %v81
    %v509 = vunpack.c.l.b16 %v82
    %v510 = vunpack.c.h.b16 %v82
    %v511 = vunpack.c.l.b16 %v83
    %v512 = vunpack.c.h.b16 %v83
    %v513 = vunpack.c.l.b16 %v84
    %v514 = vunpack.c.h.b16 %v84
    %v515 = vunpack.c.l.b16 %v85
    %v516 = vunpack.c.h.b16 %v85
    %v517 = vunpack.c.l.b16 %v86
    %v518 = vunpack.c.h.b16 %v86
    %v519 = vunpack.c.l.b16 %v87
    %v520 = vunpack.c.h.b16 %v87
    %v521 = vunpack.c.l.b16 %v88
    %v522 = vunpack.c.h.b16 %v88
    %v523 = vunpack.c.l.b16 %v89
    %v524 = vunpack.c.h.b16 %v89
    %v525 = vunpack.c.l.b16 %v90
    %v526 = vunpack.c.h.b16 %v90
    %v527 = vunpack.c.l.b16 %v91
    %v528 = vunpack.c.h.b16 %v91
    %v529 = vunpack.c.l.b16 %v92
    %v530 = vunpack.c.h.b16 %v92
    %v531 = vunpack.c.l.b16 %v93
    %v532 = vunpack.c.h.b16 %v93
    %v533 = vunpack.c.l.b16 %v94
    %v534 = vunpack.c.h.b16 %v94
    %v535 = vunpack.c.l.b16 %v95
    %v536 = vunpack.c.h.b16 %v95
    %v537 = vunpack.c.l.b16 %v96
    %v538 = vunpack.c.h.b16 %v96
    %v539 = vunpack.c.l.b16 %v97
    %v540 = vunpack.c.h.b16 %v97
    %v541 = vunpack.c.l.b16 %v98
    %v542 = vunpack.c.h.b16 %v98
    %v543 = vunpack.c.l.b16 %v99
    %v544 = vunpack.c.h.b16 %v99
    %v545 = vunpack.c.l.b16 %v100
    %v546 = vunpack.c.h.b16 %v100
    %v547 = vunpack.c.l.b16 %v101
    %v548 = vunpack.c.h.b16 %v101
    %v549 = vunpack.c.l.b16 %v102
    %v550 = vunpack.c.h.b16 %v102
    %v551 = vunpack.c.l.b16 %v103
    %v552 = vunpack.c.h.b16 %v103
    %v553 = vunpack.c.l.b16 %v104
    %v554 = vunpack.c.h.b16 %v104
    %v555 = vunpack.c.l.b16 %v105
    %v556 = vunpack.c.h.b16 %v105
    %v557 = vunpack.c.l.b16 %v106
    %v558 = vunpack.c.h.b16 %v106
    %v559 = vunpack.c.l.b16 %v107
    %v560 = vunpack.c.h.b16 %v107
    %v561 = vunpack.c.l.b16 %v108
    %v562 = vunpack.c.h.b16 %v108
    %v563 = vunpack.c.l.b16 %v109
    %v564 = vunpack.c.h.b16 %v109
    %v565 = vunpack.c.l.b16 %v110
    %v566 = vunpack.c.h.b16 %v110
    %v567 = vunpack.c.l.b16 %v111
    %v568 = vunpack.c.h.b16 %v111
    %v569 = vunpack.c.l.b16 %v112
    %v570 = vunpack.c.h.b16 %v112
    %v571 = vunpack.c.l.b16 %v113
    %v572 = vunpack.c.h.b16 %v113
    %v573 = vunpack.c.l.b16 %v114
    %v574 = vunpack.c.h.b16 %v114
    %v575 = vunpack.c.l.b16 %v115
    %v576 = vunpack.c.h.b16 %v115
    %v577 = vunpack.c.l.b16 %v116
    %v578 = vunpack.c.h.b16 %v116
    %v579 = vunpack.c.l.b16 %v117
    %v580 = vunpack.c.h.b16 %v117
    %v581 = vunpack.c.l.b16 %v118
    %v582 = vunpack.c.h.b16 %v118
    %v583 = vunpack.c.l.b16 %v119
    %v584 = vunpack.c.h.b16 %v119
    %v585 = vunpack.c.l.b16 %v120
    %v586 = vunpack.c.h.b16 %v120
    %v587 = vunpack.c.l.b16 %v121
    %v588 = vunpack.c.h.b16 %v121
    %v589 = vunpack.c.l.b16 %v122
    %v590 = vunpack.c.h.b16 %v122
    %v591 = vunpack.c.l.b16 %v123
    %v592 = vunpack.c.h.b16 %v123
    %v593 = vunpack.c.l.b16 %v124
    %v594 = vunpack.c.h.b16 %v124
    %v595 = vunpack.c.l.b16 %v125
    %v596 = vunpack.c.h.b16 %v125
    %v597 = vunpack.c.l.b16 %v126
    %v598 = vunpack.c.h.b16 %v126
    %v599 = vunpack.c.l.b16 %v127
    %v600 = vunpack.c.h.b16 %v127
    %v601 = vunpack.c.l.b16 %v128
    %v602 = vunpack.c.h.b16 %v128
    %v603 = vunpack.c.l.b16 %v129
    %v604 = vunpack.c.h.b16 %v129
    %v605 = vunpack.c.l.b16 %v130
    %v606 = vunpack.c.h.b16 %v130
    %v607 = vunpack.c.l.b16 %v131
    %v608 = vunpack.c.h.b16 %v131
    %v609 = vunpack.c.l.b16 %v132
    %v610 = vunpack.c.h.b16 %v132
    %v611 = vunpack.c.l.b16 %v133
    %v612 = vunpack.c.h.b16 %v133
    %v613 = vunpack.c.l.b16 %v134
    %v614 = vunpack.c.h.b16 %v134
    %v615 = vunpack.c.l.b16 %v135
    %v616 = vunpack.c.h.b16 %v135
    %v617 = vunpack.c.l.b16 %v136
    %v618 = vunpack.c.h.b16 %v136
    %v619 = vunpack.c.l.b16 %v137
    %v620 = vunpack.c.h.b16 %v137
    %v621 = vunpack.c.l.b16 %v138
    %v622 = vunpack.c.h.b16 %v138
    %v623 = vunpack.c.l.b16 %v139
    %v624 = vunpack.c.h.b16 %v139
    %v625 = vunpack.c.l.b16 %v140
    %v626 = vunpack.c.h.b16 %v140
    %v627 = vunpack.c.l.b16 %v141
    %v628 = vunpack.c.h.b16 %v141
    %v629 = vunpack.c.l.b16 %v142
    %v630 = vunpack.c.h.b16 %v142
    %v631 = vunpack.c.l.b16 %v143
    %v632 = vunpack.c.h.b16 %v143
    %v633 = vunpack.c.l.b16 %v144
    %v634 = vunpack.c.h.b16 %v144
    %v635 = vunpack.c.l.b16 %v145
    %v636 = vunpack.c.h.b16 %v145
    %v637 = vunpack.c.l.b16 %v146
    %v638 = vunpack.c.h.b16 %v146
    %v639 = vunpack.c.l.b16 %v147
    %v640 = vunpack.c.h.b16 %v147
    %v641 = vunpack.c.l.b16 %v148
    %v642 = vunpack.c.h.b16 %v148
    %v643 = vunpack.c.l.b16 %v149
    %v644 = vunpack.c.h.b16 %v149
    %v645 = vunpack.c.l.b16 %v150
    %v646 = vunpack.c.h.b16 %v150
    %v647 = vunpack.c.l.b16 %v151
    %v648 = vunpack.c.h.b16 %v151
    %v649 = vunpack.c.l.b16 %v152
    %v650 = vunpack.c.h.b16 %v152
    %v651 = vunpack.c.l.b16 %v153
    %v652 = vunpack.c.h.b16 %v153
    %v653 = vunpack.c.l.b16 %v154
    %v654 = vunpack.c.h.b16 %v154
    %v655 = vunpack.c.l.b16 %v155
    %v656 = vunpack.c.h.b16 %v155
    %v657 = vunpack.c.l.b16 %v156
    %v658 = vunpack.c.h.b16 %v156
    %v659 = vunpack.c.l.b16 %v157
    %v660 = vunpack.c.h.b16 %v157
    %v661 = vunpack.c.l.b16 %v158
    %v662 = vunpack.c.h.b16 %v158
    %v663 = vunpack.c.l.b16 %v159
    %v664 = vunpack.c.h.b16 %v159
    %v665 = vunpack.c.l.b16 %v160
    %v666 = vunpack.c.h.b16 %v160
    %v667 = vunpack.c.l.b16 %v161
    %v668 = vunpack.c.h.b16 %v161
    %v669 = vunpack.c.l.b16 %v162
    %v670 = vunpack.c.h.b16 %v162
    %v671 = vunpack.c.l.b16 %v163
    %v672 = vunpack.c.h.b16 %v163
    %v673 = vunpack.c.l.b16 %v164
    %v674 = vunpack.c.h.b16 %v164
    %v675 = vunpack.c.l.b16 %v165
    %v676 = vunpack.c.h.b16 %v165
    %v677 = vunpack.c.l.b16 %v166
    %v678 = vunpack.c.h.b16 %v166
    %v679 = vunpack.c.l.b16 %v167
    %v680 = vunpack.c.h.b16 %v167
    %v681 = vunpack.c.l.b16 %v168
    %v682 = vunpack.c.h.b16 %v168
    %v683 = vunpack.c.l.b16 %v169
    %v684 = vunpack.c.h.b16 %v169
    %v685 = vunpack.c.l.b16 %v170
    %v686 = vunpack.c.h.b16 %v170
    %v687 = vunpack.c.l.b16 %v171
    %v688 = vunpack.c.h.b16 %v171
    %v689 = vunpack.c.l.b16 %v172
    %v690 = vunpack.c.h.b16 %v172
    %v691 = vunpack.c.l.b16 %v173
    %v692 = vunpack.c.h.b16 %v173
    %v693 = vunpack.c.l.b16 %v174
    %v694 = vunpack.c.h.b16 %v174
    %v695 = vunpack.c.l.b16 %v175
    %v696 = vunpack.c.h.b16 %v175
    %v697 = vunpack.c.l.b16 %v176
    %v698 = vunpack.c.h.b16 %v176
    %v699 = vunpack.c.l.b16 %v177
    %v700 = vunpack.c.h.b16 %v177
    %v701 = vunpack.c.l.b16 %v178
    %v702 = vunpack.c.h.b16 %v178
    %v703 = vunpack.c.l.b16 %v179
    %v704 = vunpack.c.h.b16 %v179
    %v705 = vunpack.c.l.b16 %v180
    %v706 = vunpack.c.h.b16 %v180
    %v707 = vunpack.c.l.b16 %v181
    %v708 = vunpack.c.h.b16 %v181
    %v709 = vunpack.c.l.b16 %v182
    %v710 = vunpack.c.h.b16 %v182
    %v711 = vunpack.c.l.b16 %v183
    %v712 = vunpack.c.h.b16 %v183
    %v713 = vunpack.c.l.b16 %v184
    %v714 = vunpack.c.h.b16 %v184
    %v715 = vunpack.c.l.b16 %v185
    %v716 = vunpack.c.h.b16 %v185
    %v717 = vunpack.c.l.b16 %v186
    %v718 = vunpack.c.h.b16 %v186
    %v719 = vunpack.c.l.b16 %v187
    %v720 = vunpack.c.h.b16 %v187
    %v721 = vunpack.c.l.b16 %v188
    %v722 = vunpack.c.h.b16 %v188
    %v723 = vunpack.c.l.b16 %v189
    %v724 = vunpack.c.h.b16 %v189
    %v725 = vunpack.c.l.b16 %v190
    %v726 = vunpack.c.h.b16 %v190
    %v727 = vunpack.c.l.b16 %v191
    %v728 = vunpack.c.h.b16 %v191
    %v729 = vunpack.c.l.b16 %v192
    %v730 = vunpack.c.h.b16 %v192
    %v731 = vunpack.c.l.b16 %v193
    %v732 = vunpack.c.h.b16 %v193
    %v733 = vunpack.c.l.b16 %v194
    %v734 = vunpack.c.h.b16 %v194
    %v735 = vunpack.c.l.b16 %v195
    %v736 = vunpack.c.h.b16 %v195
    %v737 = vunpack.c.l.b16 %v196
    %v738 = vunpack.c.h.b16 %v196
    %v739 = vunpack.c.l.b16 %v197
    %v740 = vunpack.c.h.b16 %v197
    %v741 = vunpack.c.l.b16 %v198
    %v742 = vunpack.c.h.b16 %v198
    %v743 = vunpack.c.l.b16 %v199
    %v744 = vunpack.c.h.b16 %v199
    %v745 = vunpack.c.l.b16 %v200
    %v746 = vunpack.c.h.b16 %v200
    %v747 = vunpack.c.l.b16 %v201
    %v748 = vunpack.c.h.b16 %v201
    %v749 = vunpack.c.l.b16 %v202
    %v750 = vunpack.c.h.b16 %v202
    %v751 = vunpack.c.l.b16 %v203
    %v752 = vunpack.c.h.b16 %v203
    %v753 = vunpack.c.l.b16 %v204
    %v754 = vunpack.c.h.b16 %v204
    %v755 = vunpack.c.l.b16 %v205
    %v756 = vunpack.c.h.b16 %v205
    %v757 = vunpack.c.l.b16 %v206
    %v758 = vunpack.c.h.b16 %v206
    %v759 = vunpack.c.l.b16 %v207
    %v760 = vunpack.c.h.b16 %v207
    %v761 = vunpack.c.l.b16 %v208
    %v762 = vunpack.c.h.b16 %v208
    %v763 = vunpack.c.l.b16 %v209
    %v764 = vunpack.c.h.b16 %v209
    %v765 = vunpack.c.l.b16 %v210
    %v766 = vunpack.c.h.b16 %v210
    %v767 = vunpack.c.l.b16 %v211
    %v768 = vunpack.c.h.b16 %v211
    %v769 = vunpack.c.l.b16 %v212
    %v770 = vunpack.c.h.b16 %v212
    %v771 = vunpack.c.l.b16 %v213
    %v772 = vunpack.c.h.b16 %v213
    %v773 = vunpack.c.l.b16 %v214
    %v774 = vunpack.c.h.b16 %v214
    %v775 = vunpack.c.l.b16 %v215
    %v776 = vunpack.c.h.b16 %v215
    %v777 = vunpack.c.l.b16 %v216
    %v778 = vunpack.c.h.b16 %v216
    %v779 = vunpack.c.l.b16 %v217
    %v780 = vunpack.c.h.b16 %v217
    %v781 = vunpack.c.l.b16 %v218
    %v782 = vunpack.c.h.b16 %v218
    %v783 = vunpack.c.l.b16 %v219
    %v784 = vunpack.c.h.b16 %v219
    %v785 = vunpack.c.l.b16 %v220
    %v786 = vunpack.c.h.b16 %v220
    %v787 = vunpack.c.l.b16 %v221
    %v788 = vunpack.c.h.b16 %v221
    %v789 = vunpack.c.l.b16 %v222
    %v790 = vunpack.c.h.b16 %v222
    %v791 = vunpack.c.l.b16 %v223
    %v792 = vunpack.c.h.b16 %v223
    %v793 = vunpack.c.l.b16 %v224
    %v794 = vunpack.c.h.b16 %v224
    %v795 = vunpack.c.l.b16 %v225
    %v796 = vunpack.c.h.b16 %v225
    %v797 = vunpack.c.l.b16 %v226
    %v798 = vunpack.c.h.b16 %v226
    %v799 = vunpack.c.l.b16 %v227
    %v800 = vunpack.c.h.b16 %v227
    %v801 = vunpack.c.l.b16 %v228
    %v802 = vunpack.c.h.b16 %v228
    %v803 = vunpack.c.l.b16 %v229
    %v804 = vunpack.c.h.b16 %v229
    %v805 = vunpack.c.l.b16 %v230
    %v806 = vunpack.c.h.b16 %v230
    %v807 = vunpack.c.l.b16 %v231
    %v808 = vunpack.c.h.b16 %v231
    %v809 = vunpack.c.l.b16 %v232
    %v810 = vunpack.c.h.b16 %v232
    %v811 = vunpack.c.l.b16 %v233
    %v812 = vunpack.c.h.b16 %v233
    %v813 = vunpack.c.l.b16 %v234
    %v814 = vunpack.c.h.b16 %v234
    %v815 = vunpack.c.l.b16 %v235
    %v816 = vunpack.c.h.b16 %v235
    %v817 = vunpack.c.l.b16 %v236
    %v818 = vunpack.c.h.b16 %v236
    %v819 = vunpack.c.l.b16 %v237
    %v820 = vunpack.c.h.b16 %v237
    %v821 = vunpack.c.l.b16 %v238
    %v822 = vunpack.c.h.b16 %v238
    %v823 = vunpack.c.l.b16 %v239
    %v824 = vunpack.c.h.b16 %v239
    %v825 = vunpack.c.l.b16 %v240
    %v826 = vunpack.c.h.b16 %v240
    %v827 = vunpack.c.l.b16 %v241
    %v828 = vunpack.c.h.b16 %v241
    %v829 = vunpack.c.l.b16 %v242
    %v830 = vunpack.c.h.b16 %v242
    %v831 = vunpack.c.l.b16 %v243
    %v832 = vunpack.c.h.b16 %v243
    %v833 = vunpack.c.l.b16 %v244
    %v834 = vunpack.c.h.b16 %v244
    %v835 = vunpack.c.l.b16 %v245
    %v836 = vunpack.c.h.b16 %v245
    %v837 = vunpack.c.l.b16 %v246
    %v838 = vunpack.c.h.b16 %v246
    %v839 = vunpack.c.l.b16 %v247
    %v840 = vunpack.c.h.b16 %v247
    %v841 = vunpack.c.l.b16 %v248
    %v842 = vunpack.c.h.b16 %v248
    %v843 = vunpack.c.l.b16 %v249
    %v844 = vunpack.c.h.b16 %v249
    %v845 = vunpack.c.l.b16 %v250
    %v846 = vunpack.c.h.b16 %v250
    %v847 = vunpack.c.l.b16 %v251
    %v848 = vunpack.c.h.b16 %v251
    %v849 = vunpack.c.l.b16 %v252
    %v850 = vunpack.c.h.b16 %v252
    %v851 = vunpack.c.l.b16 %v253
    %v852 = vunpack.c.h.b16 %v253
    %v853 = vunpack.c.l.b16 %v254
    %v854 = vunpack.c.h.b16 %v254
    %v855 = vunpack.c.l.b16 %v255
    %v856 = vunpack.c.h.b16 %v255
    %v857 = vunpack.c.l.b16 %v256
    %v858 = vunpack.c.h.b16 %v256
    %v859 = vunpack.c.l.b16 %v257
    %v860 = vunpack.c.h.b16 %v257
    %v861 = vunpack.c.l.b16 %v258
    %v862 = vunpack.c.h.b16 %v258
    %v863 = vunpack.c.l.b16 %v259
    %v864 = vunpack.c.h.b16 %v259
    %v865 = vunpack.c.l.b16 %v260
    %v866 = vunpack.c.h.b16 %v260
    %v867 = vpack.c.b16 %v487, %v483
    %v868 = vpack.c.b16 %v488, %v484
    %v869 = vpack.c.b16 %v489, %v485
    %v870 = vpack.c.b16 %v490, %v486
    %v871 = vpack.c.b16 %v495, %v491
    %v872 = vpack.c.b16 %v496, %v492
    %v873 = vpack.c.b16 %v497, %v493
    %v874 = vpack.c.b16 %v498, %v494
    %v875 = vpack.c.b16 %v503, %v499
    %v876 = vpack.c.b16 %v504, %v500
    %v877 = vpack.c.b16 %v505, %v501
    %v878 = vpack.c.b16 %v506, %v502
    %v879 = vpack.c.b16 %v511, %v507
    %v880 = vpack.c.b16 %v512, %v508
    %v881 = vpack.c.b16 %v513, %v509
    %v882 = vpack.c.b16 %v514, %v510
    %v883 = vpack.c.b16 %v519, %v515
    %v884 = vpack.c.b16 %v520, %v516
    %v885 = vpack.c.b16 %v521, %v517
    %v886 = vpack.c.b16 %v522, %v518
    %v887 = vpack.c.b16 %v527, %v523
    %v888 = vpack.c.b16 %v528, %v524
    %v889 = vpack.c.b16 %v529, %v525
    %v890 = vpack.c.b16 %v530, %v526
    %v891 = vpack.c.b16 %v535, %v531
    %v892 = vpack.c.b16 %v536, %v532
    %v893 = vpack.c.b16 %v537, %v533
    %v894 = vpack.c.b16 %v538, %v534
    %v895 = vpack.c.b16 %v543, %v539
    %v896 = vpack.c.b16 %v544, %v540
    %v897 = vpack.c.b16 %v545, %v541
    %v898 = vpack.c.b16 %v546, %v542
    %v899 = vpack.c.b16 %v551, %v547
    %v900 = vpack.c.b16 %v552, %v548
    %v901 = vpack.c.b16 %v553, %v549
    %v902 = vpack.c.b16 %v554, %v550
    %v903 = vpack.c.b16 %v559, %v555
    %v904 = vpack.c.b16 %v560, %v556
    %v905 = vpack.c.b16 %v561, %v557
    %v906 = vpack.c.b16 %v562, %v558
    %v907 = vpack.c.b16 %v567, %v563
    %v908 = vpack.c.b16 %v568, %v564
    %v909 = vpack.c.b16 %v569, %v565
    %v910 = vpack.c.b16 %v570, %v566
    %v911 = vpack.c.b16 %v575, %v571
    %v912 = vpack.c.b16 %v576, %v572
    %v913 = vpack.c.b16 %v577, %v573
    %v914 = vpack.c.b16 %v578, %v574
    %v915 = vpack.c.b16 %v583, %v579
    %v916 = vpack.c.b16 %v584, %v580
    %v917 = vpack.c.b16 %v585, %v581
    %v918 = vpack.c.b16 %v586, %v582
    %v919 = vpack.c.b16 %v591, %v587
    %v920 = vpack.c.b16 %v592, %v588
    %v921 = vpack.c.b16 %v593, %v589
    %v922 = vpack.c.b16 %v594, %v590
    %v923 = vpack.c.b16 %v599, %v595
    %v924 = vpack.c.b16 %v600, %v596
    %v925 = vpack.c.b16 %v601, %v597
    %v926 = vpack.c.b16 %v602, %v598
    %v927 = vpack.c.b16 %v607, %v603
    %v928 = vpack.c.b16 %v608, %v604
    %v929 = vpack.c.b16 %v609, %v605
    %v930 = vpack.c.b16 %v610, %v606
    %v931 = vpack.c.b16 %v615, %v611
    %v932 = vpack.c.b16 %v616, %v612
    %v933 = vpack.c.b16 %v617, %v613
    %v934 = vpack.c.b16 %v618, %v614
    %v935 = vpack.c.b16 %v623, %v619
    %v936 = vpack.c.b16 %v624, %v620
    %v937 = vpack.c.b16 %v625, %v621
    %v938 = vpack.c.b16 %v626, %v622
    %v939 = vpack.c.b16 %v631, %v627
    %v940 = vpack.c.b16 %v632, %v628
    %v941 = vpack.c.b16 %v633, %v629
    %v942 = vpack.c.b16 %v634, %v630
    %v943 = vpack.c.b16 %v639, %v635
    %v944 = vpack.c.b16 %v640, %v636
    %v945 = vpack.c.b16 %v641, %v637
    %v946 = vpack.c.b16 %v642, %v638
    %v947 = vpack.c.b16 %v647, %v643
    %v948 = vpack.c.b16 %v648, %v644
    %v949 = vpack.c.b16 %v649, %v645
    %v950 = vpack.c.b16 %v650, %v646
    %v951 = vpack.c.b16 %v655, %v651
    %v952 = vpack.c.b16 %v656, %v652
    %v953 = vpack.c.b16 %v657, %v653
    %v954 = vpack.c.b16 %v658, %v654
    %v955 = vpack.c.b16 %v663, %v659
    %v956 = vpack.c.b16 %v664, %v660
    %v957 = vpack.c.b16 %v665, %v661
    %v958 = vpack.c.b16 %v666, %v662
    %v959 = vpack.c.b16 %v671, %v667
    %v960 = vpack.c.b16 %v672, %v668
    %v961 = vpack.c.b16 %v673, %v669
    %v962 = vpack.c.b16 %v674, %v670
    %v963 = vpack.c.b16 %v679, %v675
    %v964 = vpack.c.b16 %v680, %v676
    %v965 = vpack.c.b16 %v681, %v677
    %v966 = vpack.c.b16 %v682, %v678
    %v967 = vpack.c.b16 %v687, %v683
    %v968 = vpack.c.b16 %v688, %v684
    %v969 = vpack.c.b16 %v689, %v685
    %v970 = vpack.c.b16 %v690, %v686
    %v971 = vpack.c.b16 %v695, %v691
    %v972 = vpack.c.b16 %v696, %v692
    %v973 = vpack.c.b16 %v697, %v693
    %v974 = vpack.c.b16 %v698, %v694
    %v975 = vpack.c.b16 %v703, %v699
    %v976 = vpack.c.b16 %v704, %v700
    %v977 = vpack.c.b16 %v705, %v701
    %v978 = vpack.c.b16 %v706, %v702
    %v979 = vpack.c.b16 %v711, %v707
    %v980 = vpack.c.b16 %v712, %v708
    %v981 = vpack.c.b16 %v713, %v709
    %v982 = vpack.c.b16 %v714, %v710
    %v983 = vpack.c.b16 %v719, %v715
    %v984 = vpack.c.b16 %v720, %v716
    %v985 = vpack.c.b16 %v721, %v717
    %v986 = vpack.c.b16 %v722, %v718
    %v987 = vpack.c.b16 %v727, %v723
    %v988 = vpack.c.b16 %v728, %v724
    %v989 = vpack.c.b16 %v729, %v725
    %v990 = vpack.c.b16 %v730, %v726
    %v991 = vpack.c.b16 %v735, %v731
    %v992 = vpack.c.b16 %v736, %v732
    %v993 = vpack.c.b16 %v737, %v733
    %v994 = vpack.c.b16 %v738, %v734
    %v995 = vpack.c.b16 %v743, %v739
    %v996 = vpack.c.b16 %v744, %v740
    %v997 = vpack.c.b16 %v745, %v741
    %v998 = vpack.c.b16 %v746, %v742
    %v999 = vpack.c.b16 %v751, %v747
    %v1000 = vpack.c.b16 %v752, %v748
    %v1001 = vpack.c.b16 %v753, %v749
    %v1002 = vpack.c.b16 %v754, %v750
    %v1003 = vpack.c.b16 %v759, %v755
    %v1004 = vpack.c.b16 %v760, %v756
    %v1005 = vpack.c.b16 %v761, %v757
    %v1006 = vpack.c.b16 %v762, %v758
    %v1007 = vpack.c.b16 %v767, %v763
    %v1008 = vpack.c.b16 %v768, %v764
    %v1009 = vpack.c.b16 %v769, %v765
    %v1010 = vpack.c.b16 %v770, %v766
    %v1011 = vpack.c.b16 %v775, %v771
    %v1012 = vpack.c.b16 %v776, %v772
    %v1013 = vpack.c.b16 %v777, %v773
    %v1014 = vpack.c.b16 %v778, %v774
    %v1015 = vpack.c.b16 %v783, %v779
    %v1016 = vpack.c.b16 %v784, %v780
    %v1017 = vpack.c.b16 %v785, %v781
    %v1018 = vpack.c.b16 %v786, %v782
    %v1019 = vpack.c.b16 %v791, %v787
    %v1020 = vpack.c.b16 %v792, %v788
    %v1021 = vpack.c.b16 %v793, %v789
    %v1022 = vpack.c.b16 %v794, %v790
    %v1023 = vpack.c.b16 %v799, %v795
    %v1024 = vpack.c.b16 %v800, %v796
    %v1025 = vpack.c.b16 %v801, %v797
    %v1026 = vpack.c.b16 %v802, %v798
    %v1027 = vpack.c.b16 %v807, %v803
    %v1028 = vpack.c.b16 %v808, %v804
    %v1029 = vpack.c.b16 %v809, %v805
    %v1030 = vpack.c.b16 %v810, %v806
    %v1031 = vpack.c.b16 %v815, %v811
    %v1032 = vpack.c.b16 %v816, %v812
    %v1033 = vpack.c.b16 %v817, %v813
    %v1034 = vpack.c.b16 %v818, %v814
    %v1035 = vpack.c.b16 %v823, %v819
    %v1036 = vpack.c.b16 %v824, %v820
    %v1037 = vpack.c.b16 %v825, %v821
    %v1038 = vpack.c.b16 %v826, %v822
    %v1039 = vpack.c.b16 %v831, %v827
    %v1040 = vpack.c.b16 %v832, %v828
    %v1041 = vpack.c.b16 %v833, %v829
    %v1042 = vpack.c.b16 %v834, %v830
    %v1043 = vpack.c.b16 %v839, %v835
    %v1044 = vpack.c.b16 %v840, %v836
    %v1045 = vpack.c.b16 %v841, %v837
    %v1046 = vpack.c.b16 %v842, %v838
    %v1047 = vpack.c.b16 %v847, %v843
    %v1048 = vpack.c.b16 %v848, %v844
    %v1049 = vpack.c.b16 %v849, %v845
    %v1050 = vpack.c.b16 %v850, %v846
    %v1051 = vpack.c.b16 %v855, %v851
    %v1052 = vpack.c.b16 %v856, %v852
    %v1053 = vpack.c.b16 %v857, %v853
    %v1054 = vpack.c.b16 %v858, %v854
    %v1055 = vpack.c.b16 %v863, %v859
    %v1056 = vpack.c.b16 %v864, %v860
    %v1057 = vpack.c.b16 %v865, %v861
    %v1058 = vpack.c.b16 %v866, %v862
    %1251 = vmatprep.subr.bf16.mxu0 %v868
    %1252 = vmatpush1.bf16.msra.mxu0 %v867
    %1253 = vmatprep.subr.bf16.mxu0 %v872
    %1254 = vmatpush1.bf16.msra.mxu0 %v871
    %1255 = vmatprep.subr.bf16.mxu0 %v876
    %1256 = vmatpush1.bf16.msra.mxu0 %v875
    %1257 = vmatprep.subr.bf16.mxu0 %v880
    %1258 = vmatpush1.bf16.msra.mxu0 %v879
    %1259 = vmatprep.subr.bf16.mxu0 %v884
    %1260 = vmatpush1.bf16.msra.mxu0 %v883
    %1261 = vmatprep.subr.bf16.mxu0 %v888
    %1262 = vmatpush1.bf16.msra.mxu0 %v887
    %1263 = vmatprep.subr.bf16.mxu0 %v892
    %1264 = vmatpush1.bf16.msra.mxu0 %v891
    %1265 = vmatprep.subr.bf16.mxu0 %v896
    %1266 = vmatpush1.bf16.msra.mxu0 %v895
    %1267 = vmatprep.subr.bf16.mxu0 %v900
    %1268 = vmatpush1.bf16.msra.mxu0 %v899
    %1269 = vmatprep.subr.bf16.mxu0 %v904
    %1270 = vmatpush1.bf16.msra.mxu0 %v903
    %1271 = vmatprep.subr.bf16.mxu0 %v908
    %1272 = vmatpush1.bf16.msra.mxu0 %v907
    %1273 = vmatprep.subr.bf16.mxu0 %v912
    %1274 = vmatpush1.bf16.msra.mxu0 %v911
    %1275 = vmatprep.subr.bf16.mxu0 %v916
    %1276 = vmatpush1.bf16.msra.mxu0 %v915
    %1277 = vmatprep.subr.bf16.mxu0 %v920
    %1278 = vmatpush1.bf16.msra.mxu0 %v919
    %1279 = vmatprep.subr.bf16.mxu0 %v924
    %1280 = vmatpush1.bf16.msra.mxu0 %v923
    %1281 = vmatprep.subr.bf16.mxu0 %v928
    %1282 = vmatpush1.bf16.msra.mxu0 %v927
    %1283 = vmatprep.mubr.bf16.mxu0 %v280
    %1284 = vmatmul.mubr.bf16.gmra.mrb[0].mxu0 %v279
    %v1285 = vpop.f32.mrb[0].mxu0
    %v1286 = vadd.f32 0.0, %v1285
    %v1287 = vpop.f32.mrb[0].mxu0
    %v1288 = vadd.f32 0.0, %v1287
    %v1289 = vpop.f32.mrb[0].mxu0
    %v1290 = vadd.f32 0.0, %v1289
    %v1291 = vpop.f32.mrb[0].mxu0
    %v1292 = vadd.f32 0.0, %v1291
    %1293 = vdwg.mxu0
    %1294 = vmatprep.subr.bf16.mxu0 %v932
    %1295 = vmatpush1.bf16.msra.mxu0 %v931
    %1296 = vmatprep.subr.bf16.mxu0 %v936
    %1297 = vmatpush1.bf16.msra.mxu0 %v935
    %1298 = vmatprep.subr.bf16.mxu0 %v940
    %1299 = vmatpush1.bf16.msra.mxu0 %v939
    %1300 = vmatprep.subr.bf16.mxu0 %v944
    %1301 = vmatpush1.bf16.msra.mxu0 %v943
    %1302 = vmatprep.subr.bf16.mxu0 %v948
    %1303 = vmatpush1.bf16.msra.mxu0 %v947
    %1304 = vmatprep.subr.bf16.mxu0 %v952
    %1305 = vmatpush1.bf16.msra.mxu0 %v951
    %1306 = vmatprep.subr.bf16.mxu0 %v956
    %1307 = vmatpush1.bf16.msra.mxu0 %v955
    %1308 = vmatprep.subr.bf16.mxu0 %v960
    %1309 = vmatpush1.bf16.msra.mxu0 %v959
    %1310 = vmatprep.subr.bf16.mxu0 %v964
    %1311 = vmatpush1.bf16.msra.mxu0 %v963
    %1312 = vmatprep.subr.bf16.mxu0 %v968
    %1313 = vmatpush1.bf16.msra.mxu0 %v967
    %1314 = vmatprep.subr.bf16.mxu0 %v972
    %1315 = vmatpush1.bf16.msra.mxu0 %v971
    %1316 = vmatprep.subr.bf16.mxu0 %v976
    %1317 = vmatpush1.bf16.msra.mxu0 %v975
    %1318 = vmatprep.subr.bf16.mxu0 %v980
    %1319 = vmatpush1.bf16.msra.mxu0 %v979
    %1320 = vmatprep.subr.bf16.mxu0 %v984
    %1321 = vmatpush1.bf16.msra.mxu0 %v983
    %1322 = vmatprep.subr.bf16.mxu0 %v988
    %1323 = vmatpush1.bf16.msra.mxu0 %v987
    %1324 = vmatprep.subr.bf16.mxu0 %v992
    %1325 = vmatpush1.bf16.msra.mxu0 %v991
    %1326 = vmatprep.mubr.bf16.mxu0 %v282
    %1327 = vmatmul.mubr.bf16.gmra.mrb[0].mxu0 %v281
    %v1328 = vpop.f32.mrb[0].mxu0
    %v1329 = vadd.f32 %v1286, %v1328
    %v1330 = vpop.f32.mrb[0].mxu0
    %v1331 = vadd.f32 %v1288, %v1330
    %v1332 = vpop.f32.mrb[0].mxu0
    %v1333 = vadd.f32 %v1290, %v1332
    %v1334 = vpop.f32.mrb[0].mxu0
    %v1335 = vadd.f32 %v1292, %v1334
    %1336 = vdwg.mxu0
    %1337 = vmatprep.subr.bf16.mxu0 %v996
    %1338 = vmatpush1.bf16.msra.mxu0 %v995
    %1339 = vmatprep.subr.bf16.mxu0 %v1000
    %1340 = vmatpush1.bf16.msra.mxu0 %v999
    %1341 = vmatprep.subr.bf16.mxu0 %v1004
    %1342 = vmatpush1.bf16.msra.mxu0 %v1003
    %1343 = vmatprep.subr.bf16.mxu0 %v1008
    %1344 = vmatpush1.bf16.msra.mxu0 %v1007
    %1345 = vmatprep.subr.bf16.mxu0 %v1012
    %1346 = vmatpush1.bf16.msra.mxu0 %v1011
    %1347 = vmatprep.subr.bf16.mxu0 %v1016
    %1348 = vmatpush1.bf16.msra.mxu0 %v1015
    %1349 = vmatprep.subr.bf16.mxu0 %v1020
    %1350 = vmatpush1.bf16.msra.mxu0 %v1019
    %1351 = vmatprep.subr.bf16.mxu0 %v1024
    %1352 = vmatpush1.bf16.msra.mxu0 %v1023
    %1353 = vmatprep.subr.bf16.mxu0 %v1028
    %1354 = vmatpush1.bf16.msra.mxu0 %v1027
    %1355 = vmatprep.subr.bf16.mxu0 %v1032
    %1356 = vmatpush1.bf16.msra.mxu0 %v1031
    %1357 = vmatprep.subr.bf16.mxu0 %v1036
    %1358 = vmatpush1.bf16.msra.mxu0 %v1035
    %1359 = vmatprep.subr.bf16.mxu0 %v1040
    %1360 = vmatpush1.bf16.msra.mxu0 %v1039
    %1361 = vmatprep.subr.bf16.mxu0 %v1044
    %1362 = vmatpush1.bf16.msra.mxu0 %v1043
    %1363 = vmatprep.subr.bf16.mxu0 %v1048
    %1364 = vmatpush1.bf16.msra.mxu0 %v1047
    %1365 = vmatprep.subr.bf16.mxu0 %v1052
    %1366 = vmatpush1.bf16.msra.mxu0 %v1051
    %1367 = vmatprep.subr.bf16.mxu0 %v1056
    %1368 = vmatpush1.bf16.msra.mxu0 %v1055
    %1369 = vmatprep.mubr.bf16.mxu0 %v284
    %1370 = vmatmul.mubr.bf16.gmra.mrb[0].mxu0 %v283
    %v1371 = vpop.f32.mrb[0].mxu0
    %v1372 = vadd.f32 %v1329, %v1371
    %v1373 = vpop.f32.mrb[0].mxu0
    %v1374 = vadd.f32 %v1331, %v1373
    %v1375 = vpop.f32.mrb[0].mxu0
    %v1376 = vadd.f32 %v1333, %v1375
    %v1377 = vpop.f32.mrb[0].mxu0
    %v1378 = vadd.f32 %v1335, %v1377
    %1379 = vdwg.mxu0
    %1380 = vmatprep.subr.bf16.mxu0 %v870
    %1381 = vmatpush1.bf16.msra.mxu0 %v869
    %1382 = vmatprep.subr.bf16.mxu0 %v874
    %1383 = vmatpush1.bf16.msra.mxu0 %v873
    %1384 = vmatprep.subr.bf16.mxu0 %v878
    %1385 = vmatpush1.bf16.msra.mxu0 %v877
    %1386 = vmatprep.subr.bf16.mxu0 %v882
    %1387 = vmatpush1.bf16.msra.mxu0 %v881
    %1388 = vmatprep.subr.bf16.mxu0 %v886
    %1389 = vmatpush1.bf16.msra.mxu0 %v885
    %1390 = vmatprep.subr.bf16.mxu0 %v890
    %1391 = vmatpush1.bf16.msra.mxu0 %v889
    %1392 = vmatprep.subr.bf16.mxu0 %v894
    %1393 = vmatpush1.bf16.msra.mxu0 %v893
    %1394 = vmatprep.subr.bf16.mxu0 %v898
    %1395 = vmatpush1.bf16.msra.mxu0 %v897
    %1396 = vmatprep.subr.bf16.mxu0 %v902
    %1397 = vmatpush1.bf16.msra.mxu0 %v901
    %1398 = vmatprep.subr.bf16.mxu0 %v906
    %1399 = vmatpush1.bf16.msra.mxu0 %v905
    %1400 = vmatprep.subr.bf16.mxu0 %v910
    %1401 = vmatpush1.bf16.msra.mxu0 %v909
    %1402 = vmatprep.subr.bf16.mxu0 %v914
    %1403 = vmatpush1.bf16.msra.mxu0 %v913
    %1404 = vmatprep.subr.bf16.mxu0 %v918
    %1405 = vmatpush1.bf16.msra.mxu0 %v917
    %1406 = vmatprep.subr.bf16.mxu0 %v922
    %1407 = vmatpush1.bf16.msra.mxu0 %v921
    %1408 = vmatprep.subr.bf16.mxu0 %v926
    %1409 = vmatpush1.bf16.msra.mxu0 %v925
    %1410 = vmatprep.subr.bf16.mxu0 %v930
    %1411 = vmatpush1.bf16.msra.mxu0 %v929
    %1412 = vmatprep.mubr.bf16.mxu0 %v280
    %1413 = vmatmul.mubr.bf16.gmra.mrb[0].mxu0 %v279
    %v1414 = vpop.f32.mrb[0].mxu0
    %v1415 = vadd.f32 0.0, %v1414
    %v1416 = vpop.f32.mrb[0].mxu0
    %v1417 = vadd.f32 0.0, %v1416
    %v1418 = vpop.f32.mrb[0].mxu0
    %v1419 = vadd.f32 0.0, %v1418
    %v1420 = vpop.f32.mrb[0].mxu0
    %v1421 = vadd.f32 0.0, %v1420
    %1422 = vdwg.mxu0
    %1423 = vmatprep.subr.bf16.mxu0 %v934
    %1424 = vmatpush1.bf16.msra.mxu0 %v933
    %1425 = vmatprep.subr.bf16.mxu0 %v938
    %1426 = vmatpush1.bf16.msra.mxu0 %v937
    %1427 = vmatprep.subr.bf16.mxu0 %v942
    %1428 = vmatpush1.bf16.msra.mxu0 %v941
    %1429 = vmatprep.subr.bf16.mxu0 %v946
    %1430 = vmatpush1.bf16.msra.mxu0 %v945
    %1431 = vmatprep.subr.bf16.mxu0 %v950
    %1432 = vmatpush1.bf16.msra.mxu0 %v949
    %1433 = vmatprep.subr.bf16.mxu0 %v954
    %1434 = vmatpush1.bf16.msra.mxu0 %v953
    %1435 = vmatprep.subr.bf16.mxu0 %v958
    %1436 = vmatpush1.bf16.msra.mxu0 %v957
    %1437 = vmatprep.subr.bf16.mxu0 %v962
    %1438 = vmatpush1.bf16.msra.mxu0 %v961
    %1439 = vmatprep.subr.bf16.mxu0 %v966
    %1440 = vmatpush1.bf16.msra.mxu0 %v965
    %1441 = vmatprep.subr.bf16.mxu0 %v970
    %1442 = vmatpush1.bf16.msra.mxu0 %v969
    %1443 = vmatprep.subr.bf16.mxu0 %v974
    %1444 = vmatpush1.bf16.msra.mxu0 %v973
    %1445 = vmatprep.subr.bf16.mxu0 %v978
    %1446 = vmatpush1.bf16.msra.mxu0 %v977
    %1447 = vmatprep.subr.bf16.mxu0 %v982
    %1448 = vmatpush1.bf16.msra.mxu0 %v981
    %1449 = vmatprep.subr.bf16.mxu0 %v986
    %1450 = vmatpush1.bf16.msra.mxu0 %v985
    %1451 = vmatprep.subr.bf16.mxu0 %v990
    %1452 = vmatpush1.bf16.msra.mxu0 %v989
    %1453 = vmatprep.subr.bf16.mxu0 %v994
    %1454 = vmatpush1.bf16.msra.mxu0 %v993
    %1455 = vmatprep.mubr.bf16.mxu0 %v282
    %1456 = vmatmul.mubr.bf16.gmra.mrb[0].mxu0 %v281
    %v1457 = vpop.f32.mrb[0].mxu0
    %v1458 = vadd.f32 %v1415, %v1457
    %v1459 = vpop.f32.mrb[0].mxu0
    %v1460 = vadd.f32 %v1417, %v1459
    %v1461 = vpop.f32.mrb[0].mxu0
    %v1462 = vadd.f32 %v1419, %v1461
    %v1463 = vpop.f32.mrb[0].mxu0
    %v1464 = vadd.f32 %v1421, %v1463
    %1465 = vdwg.mxu0
    %1466 = vmatprep.subr.bf16.mxu0 %v998
    %1467 = vmatpush1.bf16.msra.mxu0 %v997
    %1468 = vmatprep.subr.bf16.mxu0 %v1002
    %1469 = vmatpush1.bf16.msra.mxu0 %v1001
    %1470 = vmatprep.subr.bf16.mxu0 %v1006
    %1471 = vmatpush1.bf16.msra.mxu0 %v1005
    %1472 = vmatprep.subr.bf16.mxu0 %v1010
    %1473 = vmatpush1.bf16.msra.mxu0 %v1009
    %1474 = vmatprep.subr.bf16.mxu0 %v1014
    %1475 = vmatpush1.bf16.msra.mxu0 %v1013
    %1476 = vmatprep.subr.bf16.mxu0 %v1018
    %1477 = vmatpush1.bf16.msra.mxu0 %v1017
    %1478 = vmatprep.subr.bf16.mxu0 %v1022
    %1479 = vmatpush1.bf16.msra.mxu0 %v1021
    %1480 = vmatprep.subr.bf16.mxu0 %v1026
    %1481 = vmatpush1.bf16.msra.mxu0 %v1025
    %1482 = vmatprep.subr.bf16.mxu0 %v1030
    %1483 = vmatpush1.bf16.msra.mxu0 %v1029
    %1484 = vmatprep.subr.bf16.mxu0 %v1034
    %1485 = vmatpush1.bf16.msra.mxu0 %v1033
    %1486 = vmatprep.subr.bf16.mxu0 %v1038
    %1487 = vmatpush1.bf16.msra.mxu0 %v1037
    %1488 = vmatprep.subr.bf16.mxu0 %v1042
    %1489 = vmatpush1.bf16.msra.mxu0 %v1041
    %1490 = vmatprep.subr.bf16.mxu0 %v1046
    %1491 = vmatpush1.bf16.msra.mxu0 %v1045
    %1492 = vmatprep.subr.bf16.mxu0 %v1050
    %1493 = vmatpush1.bf16.msra.mxu0 %v1049
    %1494 = vmatprep.subr.bf16.mxu0 %v1054
    %1495 = vmatpush1.bf16.msra.mxu0 %v1053
    %1496 = vmatprep.subr.bf16.mxu0 %v1058
    %1497 = vmatpush1.bf16.msra.mxu0 %v1057
    %1498 = vmatprep.mubr.bf16.mxu0 %v284
    %1499 = vmatmul.mubr.bf16.gmra.mrb[0].mxu0 %v283
    %v1500 = vpop.f32.mrb[0].mxu0
    %v1501 = vadd.f32 %v1458, %v1500
    %v1502 = vpop.f32.mrb[0].mxu0
    %v1503 = vadd.f32 %v1460, %v1502
    %v1504 = vpop.f32.mrb[0].mxu0
    %v1505 = vadd.f32 %v1462, %v1504
    %v1506 = vpop.f32.mrb[0].mxu0
    %v1507 = vadd.f32 %v1464, %v1506
    %1508 = vdwg.mxu0
    %1509 = vst [vmem:[#allocation9] sm:$0xff] %v1372
    %1510 = vst [vmem:[#allocation9 + $0x8] sm:$0xff] %v1374
    %1511 = vst [vmem:[#allocation9 + $0x10] sm:$0xff] %v1501
    %1512 = vst [vmem:[#allocation9 + $0x18] sm:$0xff] %v1503
    %1513 = vst [vmem:[#allocation9 + $0x20] sm:$0xff] %v1376
    %1514 = vst [vmem:[#allocation9 + $0x28] sm:$0xff] %v1378
    %1515 = vst [vmem:[#allocation9 + $0x30] sm:$0xff] %v1505
    %1516 = vst [vmem:[#allocation9 + $0x38] sm:$0xff] %v1507
    %v1517 = vpack.c.bf16 %v1376, %v1372
    %v1518 = vpack.c.bf16 %v1378, %v1374
    %v1519 = vpack.c.bf16 %v1505, %v1501
    %v1520 = vpack.c.bf16 %v1507, %v1503
    %v1521 = vld [vmem:[#allocation7] sm:$0xf]
    %v1522 = vld [vmem:[#allocation7 + $0x4] sm:$0xf]
    %v1523 = vld [vmem:[#allocation7 + $0x8] sm:$0xf]
    %v1524 = vld [vmem:[#allocation7 + $0xc] sm:$0xf]
    %v1525 = vld [vmem:[#allocation7 + $0x10] sm:$0xf]
    %v1526 = vld [vmem:[#allocation7 + $0x14] sm:$0xf]
    %v1527 = vld [vmem:[#allocation7 + $0x18] sm:$0xf]
    %v1528 = vld [vmem:[#allocation7 + $0x1c] sm:$0xf]
    %v1529 = vld [vmem:[#allocation7 + $0x20] sm:$0xf]
    %v1530 = vld [vmem:[#allocation7 + $0x24] sm:$0xf]
    %v1531 = vld [vmem:[#allocation7 + $0x28] sm:$0xf]
    %v1532 = vld [vmem:[#allocation7 + $0x2c] sm:$0xf]
    %v1533 = vld [vmem:[#allocation7 + $0x30] sm:$0xf]
    %v1534 = vld [vmem:[#allocation7 + $0x34] sm:$0xf]
    %v1535 = vld [vmem:[#allocation7 + $0x38] sm:$0xf]
    %v1536 = vld [vmem:[#allocation7 + $0x3c] sm:$0xf]
    %v1537 = vld [vmem:[#allocation7 + $0x40] sm:$0xf]
    %v1538 = vld [vmem:[#allocation7 + $0x44] sm:$0xf]
    %v1539 = vld [vmem:[#allocation7 + $0x48] sm:$0xf]
    %v1540 = vld [vmem:[#allocation7 + $0x4c] sm:$0xf]
    %v1541 = vld [vmem:[#allocation7 + $0x50] sm:$0xf]
    %v1542 = vld [vmem:[#allocation7 + $0x54] sm:$0xf]
    %v1543 = vld [vmem:[#allocation7 + $0x58] sm:$0xf]
    %v1544 = vld [vmem:[#allocation7 + $0x5c] sm:$0xf]
    %v1545 = vld [vmem:[#allocation7 + $0x60] sm:$0xf]
    %v1546 = vld [vmem:[#allocation7 + $0x64] sm:$0xf]
    %v1547 = vld [vmem:[#allocation7 + $0x68] sm:$0xf]
    %v1548 = vld [vmem:[#allocation7 + $0x6c] sm:$0xf]
    %v1549 = vld [vmem:[#allocation7 + $0x70] sm:$0xf]
    %v1550 = vld [vmem:[#allocation7 + $0x74] sm:$0xf]
    %v1551 = vld [vmem:[#allocation7 + $0x78] sm:$0xf]
    %v1552 = vld [vmem:[#allocation7 + $0x7c] sm:$0xf]
    %v1553 = vld [vmem:[#allocation7 + $0x80] sm:$0xf]
    %v1554 = vld [vmem:[#allocation7 + $0x84] sm:$0xf]
    %v1555 = vld [vmem:[#allocation7 + $0x88] sm:$0xf]
    %v1556 = vld [vmem:[#allocation7 + $0x8c] sm:$0xf]
    %v1557 = vld [vmem:[#allocation7 + $0x90] sm:$0xf]
    %v1558 = vld [vmem:[#allocation7 + $0x94] sm:$0xf]
    %v1559 = vld [vmem:[#allocation7 + $0x98] sm:$0xf]
    %v1560 = vld [vmem:[#allocation7 + $0x9c] sm:$0xf]
    %v1561 = vld [vmem:[#allocation7 + $0xa0] sm:$0xf]
    %v1562 = vld [vmem:[#allocation7 + $0xa4] sm:$0xf]
    %v1563 = vld [vmem:[#allocation7 + $0xa8] sm:$0xf]
    %v1564 = vld [vmem:[#allocation7 + $0xac] sm:$0xf]
    %v1565 = vld [vmem:[#allocation7 + $0xb0] sm:$0xf]
    %v1566 = vld [vmem:[#allocation7 + $0xb4] sm:$0xf]
    %v1567 = vld [vmem:[#allocation7 + $0xb8] sm:$0xf]
    %v1568 = vld [vmem:[#allocation7 + $0xbc] sm:$0xf]
    %v1569 = vld [vmem:[#allocation7 + $0xc0] sm:$0xf]
    %v1570 = vld [vmem:[#allocation7 + $0xc4] sm:$0xf]
    %v1571 = vld [vmem:[#allocation7 + $0xc8] sm:$0xf]
    %v1572 = vld [vmem:[#allocation7 + $0xcc] sm:$0xf]
    %v1573 = vld [vmem:[#allocation7 + $0xd0] sm:$0xf]
    %v1574 = vld [vmem:[#allocation7 + $0xd4] sm:$0xf]
    %v1575 = vld [vmem:[#allocation7 + $0xd8] sm:$0xf]
    %v1576 = vld [vmem:[#allocation7 + $0xdc] sm:$0xf]
    %v1577 = vld [vmem:[#allocation7 + $0xe0] sm:$0xf]
    %v1578 = vld [vmem:[#allocation7 + $0xe4] sm:$0xf]
    %v1579 = vld [vmem:[#allocation7 + $0xe8] sm:$0xf]
    %v1580 = vld [vmem:[#allocation7 + $0xec] sm:$0xf]
    %v1581 = vld [vmem:[#allocation7 + $0xf0] sm:$0xf]
    %v1582 = vld [vmem:[#allocation7 + $0xf4] sm:$0xf]
    %v1583 = vld [vmem:[#allocation7 + $0xf8] sm:$0xf]
    %v1584 = vld [vmem:[#allocation7 + $0xfc] sm:$0xf]
    %v1585 = vld [vmem:[%s3] sm:$0x1]
    %v1587 = vlaneseq
    %v1588 = vshrl.u32 %v1587, 7
    %v1589 = vsub.s32 0, %v1588
    %v1590 = vrot.slane %v1585, %v1589
    %v1656 = vunpack.c.l.b16 %v1521
    %v1657 = vunpack.c.l.b16 %v1522
    %v1658 = vunpack.c.l.b16 %v1523
    %v1659 = vunpack.c.l.b16 %v1524
    %v1660 = vunpack.c.l.b16 %v1525
    %v1661 = vunpack.c.l.b16 %v1526
    %v1662 = vunpack.c.l.b16 %v1527
    %v1663 = vunpack.c.l.b16 %v1528
    %v1664 = vunpack.c.l.b16 %v1529
    %v1665 = vunpack.c.l.b16 %v1530
    %v1666 = vunpack.c.l.b16 %v1531
    %v1667 = vunpack.c.l.b16 %v1532
    %v1668 = vunpack.c.l.b16 %v1533
    %v1669 = vunpack.c.l.b16 %v1534
    %v1670 = vunpack.c.l.b16 %v1535
    %v1671 = vunpack.c.l.b16 %v1536
    %v1672 = vunpack.c.l.b16 %v1537
    %v1673 = vunpack.c.l.b16 %v1538
    %v1674 = vunpack.c.l.b16 %v1539
    %v1675 = vunpack.c.l.b16 %v1540
    %v1676 = vunpack.c.l.b16 %v1541
    %v1677 = vunpack.c.l.b16 %v1542
    %v1678 = vunpack.c.l.b16 %v1543
    %v1679 = vunpack.c.l.b16 %v1544
    %v1680 = vunpack.c.l.b16 %v1545
    %v1681 = vunpack.c.l.b16 %v1546
    %v1682 = vunpack.c.l.b16 %v1547
    %v1683 = vunpack.c.l.b16 %v1548
    %v1684 = vunpack.c.l.b16 %v1549
    %v1685 = vunpack.c.l.b16 %v1550
    %v1686 = vunpack.c.l.b16 %v1551
    %v1687 = vunpack.c.l.b16 %v1552
    %v1688 = vunpack.c.l.b16 %v1553
    %v1689 = vunpack.c.l.b16 %v1554
    %v1690 = vunpack.c.l.b16 %v1555
    %v1691 = vunpack.c.l.b16 %v1556
    %v1692 = vunpack.c.l.b16 %v1557
    %v1693 = vunpack.c.l.b16 %v1558
    %v1694 = vunpack.c.l.b16 %v1559
    %v1695 = vunpack.c.l.b16 %v1560
    %v1696 = vunpack.c.l.b16 %v1561
    %v1697 = vunpack.c.l.b16 %v1562
    %v1698 = vunpack.c.l.b16 %v1563
    %v1699 = vunpack.c.l.b16 %v1564
    %v1700 = vunpack.c.l.b16 %v1565
    %v1701 = vunpack.c.l.b16 %v1566
    %v1702 = vunpack.c.l.b16 %v1567
    %v1703 = vunpack.c.l.b16 %v1568
    %v1704 = vunpack.c.l.b16 %v1569
    %v1705 = vunpack.c.l.b16 %v1570
    %v1706 = vunpack.c.l.b16 %v1571
    %v1707 = vunpack.c.l.b16 %v1572
    %v1708 = vunpack.c.l.b16 %v1573
    %v1709 = vunpack.c.l.b16 %v1574
    %v1710 = vunpack.c.l.b16 %v1575
    %v1711 = vunpack.c.l.b16 %v1576
    %v1712 = vunpack.c.l.b16 %v1577
    %v1713 = vunpack.c.l.b16 %v1578
    %v1714 = vunpack.c.l.b16 %v1579
    %v1715 = vunpack.c.l.b16 %v1580
    %v1716 = vunpack.c.l.b16 %v1581
    %v1717 = vunpack.c.l.b16 %v1582
    %v1718 = vunpack.c.l.b16 %v1583
    %v1719 = vunpack.c.l.b16 %v1584
    %v1720 = vpack.c.b16 %v1657, %v1656
    %v1721 = vpack.c.b16 %v1659, %v1658
    %v1722 = vpack.c.b16 %v1661, %v1660
    %v1723 = vpack.c.b16 %v1663, %v1662
    %v1724 = vpack.c.b16 %v1665, %v1664
    %v1725 = vpack.c.b16 %v1667, %v1666
    %v1726 = vpack.c.b16 %v1669, %v1668
    %v1727 = vpack.c.b16 %v1671, %v1670
    %v1728 = vpack.c.b16 %v1673, %v1672
    %v1729 = vpack.c.b16 %v1675, %v1674
    %v1730 = vpack.c.b16 %v1677, %v1676
    %v1731 = vpack.c.b16 %v1679, %v1678
    %v1732 = vpack.c.b16 %v1681, %v1680
    %v1733 = vpack.c.b16 %v1683, %v1682
    %v1734 = vpack.c.b16 %v1685, %v1684
    %v1735 = vpack.c.b16 %v1687, %v1686
    %v1736 = vpack.c.b16 %v1689, %v1688
    %v1737 = vpack.c.b16 %v1691, %v1690
    %v1738 = vpack.c.b16 %v1693, %v1692
    %v1739 = vpack.c.b16 %v1695, %v1694
    %v1740 = vpack.c.b16 %v1697, %v1696
    %v1741 = vpack.c.b16 %v1699, %v1698
    %v1742 = vpack.c.b16 %v1701, %v1700
    %v1743 = vpack.c.b16 %v1703, %v1702
    %v1744 = vpack.c.b16 %v1705, %v1704
    %v1745 = vpack.c.b16 %v1707, %v1706
    %v1746 = vpack.c.b16 %v1709, %v1708
    %v1747 = vpack.c.b16 %v1711, %v1710
    %v1748 = vpack.c.b16 %v1713, %v1712
    %v1749 = vpack.c.b16 %v1715, %v1714
    %v1750 = vpack.c.b16 %v1717, %v1716
    %v1751 = vpack.c.b16 %v1719, %v1718
    %1784 = vmatprep.subr.bf16.mxu0 0
    %1785 = vmatpush1.bf16.msra.mxu0 %v1720
    %1786 = vmatprep.subr.bf16.mxu0 0
    %1787 = vmatpush1.bf16.msra.mxu0 %v1721
    %1788 = vmatprep.subr.bf16.mxu0 0
    %1789 = vmatpush1.bf16.msra.mxu0 %v1722
    %1790 = vmatprep.subr.bf16.mxu0 0
    %1791 = vmatpush1.bf16.msra.mxu0 %v1723
    %1792 = vmatprep.subr.bf16.mxu0 0
    %1793 = vmatpush1.bf16.msra.mxu0 %v1724
    %1794 = vmatprep.subr.bf16.mxu0 0
    %1795 = vmatpush1.bf16.msra.mxu0 %v1725
    %1796 = vmatprep.subr.bf16.mxu0 0
    %1797 = vmatpush1.bf16.msra.mxu0 %v1726
    %1798 = vmatprep.subr.bf16.mxu0 0
    %1799 = vmatpush1.bf16.msra.mxu0 %v1727
    %1800 = vmatprep.subr.bf16.mxu0 0
    %1801 = vmatpush1.bf16.msra.mxu0 %v1728
    %1802 = vmatprep.subr.bf16.mxu0 0
    %1803 = vmatpush1.bf16.msra.mxu0 %v1729
    %1804 = vmatprep.subr.bf16.mxu0 0
    %1805 = vmatpush1.bf16.msra.mxu0 %v1730
    %1806 = vmatprep.subr.bf16.mxu0 0
    %1807 = vmatpush1.bf16.msra.mxu0 %v1731
    %1808 = vmatprep.subr.bf16.mxu0 0
    %1809 = vmatpush1.bf16.msra.mxu0 %v1732
    %1810 = vmatprep.subr.bf16.mxu0 0
    %1811 = vmatpush1.bf16.msra.mxu0 %v1733
    %1812 = vmatprep.subr.bf16.mxu0 0
    %1813 = vmatpush1.bf16.msra.mxu0 %v1734
    %1814 = vmatprep.subr.bf16.mxu0 0
    %1815 = vmatpush1.bf16.msra.mxu0 %v1735
    %1816 = vmatprep.mubr.bf16.mxu0 %v1518
    %1817 = vmatmul.mubr.bf16.gmra.mrb[0].mxu0 %v1517
    %v1818 = vpop.f32.mrb[0].mxu0
    %v1819 = vadd.f32 %v1590, %v1818
    %v1820 = vpop.f32.mrb[0].mxu0
    %v1821 = vpop.f32.mrb[0].mxu0
    %v1822 = vadd.f32 %v1590, %v1821
    %v1823 = vpop.f32.mrb[0].mxu0
    %1824 = vdwg.mxu0
    %1825 = vmatprep.subr.bf16.mxu0 0
    %1826 = vmatpush1.bf16.msra.mxu0 %v1736
    %1827 = vmatprep.subr.bf16.mxu0 0
    %1828 = vmatpush1.bf16.msra.mxu0 %v1737
    %1829 = vmatprep.subr.bf16.mxu0 0
    %1830 = vmatpush1.bf16.msra.mxu0 %v1738
    %1831 = vmatprep.subr.bf16.mxu0 0
    %1832 = vmatpush1.bf16.msra.mxu0 %v1739
    %1833 = vmatprep.subr.bf16.mxu0 0
    %1834 = vmatpush1.bf16.msra.mxu0 %v1740
    %1835 = vmatprep.subr.bf16.mxu0 0
    %1836 = vmatpush1.bf16.msra.mxu0 %v1741
    %1837 = vmatprep.subr.bf16.mxu0 0
    %1838 = vmatpush1.bf16.msra.mxu0 %v1742
    %1839 = vmatprep.subr.bf16.mxu0 0
    %1840 = vmatpush1.bf16.msra.mxu0 %v1743
    %1841 = vmatprep.subr.bf16.mxu0 0
    %1842 = vmatpush1.bf16.msra.mxu0 %v1744
    %1843 = vmatprep.subr.bf16.mxu0 0
    %1844 = vmatpush1.bf16.msra.mxu0 %v1745
    %1845 = vmatprep.subr.bf16.mxu0 0
    %1846 = vmatpush1.bf16.msra.mxu0 %v1746
    %1847 = vmatprep.subr.bf16.mxu0 0
    %1848 = vmatpush1.bf16.msra.mxu0 %v1747
    %1849 = vmatprep.subr.bf16.mxu0 0
    %1850 = vmatpush1.bf16.msra.mxu0 %v1748
    %1851 = vmatprep.subr.bf16.mxu0 0
    %1852 = vmatpush1.bf16.msra.mxu0 %v1749
    %1853 = vmatprep.subr.bf16.mxu0 0
    %1854 = vmatpush1.bf16.msra.mxu0 %v1750
    %1855 = vmatprep.subr.bf16.mxu0 0
    %1856 = vmatpush1.bf16.msra.mxu0 %v1751
    %1857 = vmatprep.mubr.bf16.mxu0 %v1520
    %1858 = vmatmul.mubr.bf16.gmra.mrb[0].mxu0 %v1519
    %v1859 = vpop.f32.mrb[0].mxu0
    %v1860 = vadd.f32 %v1819, %v1859
    %v1861 = vpop.f32.mrb[0].mxu0
    %v1862 = vpop.f32.mrb[0].mxu0
    %v1863 = vadd.f32 %v1822, %v1862
    %v1864 = vpop.f32.mrb[0].mxu0
    %1865 = vdwg.mxu0
    %1866 = vst [vmem:[#allocation8] sm:$0xff] %v1860
    %1867 = vst [vmem:[#allocation8 + $0x8] sm:$0xff] %v1863
    // Predicated region
    $region30: #{tpu_custom_call.1} parent=1 // pred_check
      _
    $region31: #{tpu_custom_call.1} parent=1 // pred_check_branch
      %1869 = sbr.rel (0) target = $region33
    $region32: #{tpu_custom_call.1} parent=1 // pred_region
      %s1871 = ssub.s32 256, 256
      %1872 = vsyncadd [#allocation4], %s1871
      %s1873 = sshll.u32 [#allocation8], 4
      %s1874 = int_to_ptr.vmem [resolvable:$true] %s1873
      %1879 = dma.vmem_to_hbm [thread:$0]  %s1874, 256, %s4, [#allocation4], 128, 128, 8
    $region33: #{tpu_custom_call.1} parent=1 // pred_fallthru
      _
    // Predicated region
    $region34: #{tpu_custom_call.1} parent=1 // pred_check
      _
    $region35: #{tpu_custom_call.1} parent=1 // pred_check_branch
      %1881 = sbr.rel (0) target = $region37
    $region36: #{tpu_custom_call.1} parent=1 // pred_region
      %s1883 = ssub.s32 1024, 1024
      %1884 = vsyncadd [#allocation10], %s1883
      %s1885 = sshll.u32 [#allocation9], 4
      %s1886 = int_to_ptr.vmem [resolvable:$true] %s1885
      %1891 = dma.vmem_to_hbm [thread:$0]  %s1886, 1024, %s5, [#allocation10], 512, 512, 32
    $region37: #{tpu_custom_call.1} parent=1 // pred_fallthru
      _
    // Predicated region
    $region38: #{tpu_custom_call.1} parent=1 // pred_check
      _
    $region39: #{tpu_custom_call.1} parent=1 // pred_check_branch
      %1893 = sbr.rel (0) target = $region41
    $region40: #{tpu_custom_call.1} parent=1 // pred_region
      %1894 = dma.done [#allocation4], 256
    $region41: #{tpu_custom_call.1} parent=1 // pred_fallthru
      _
    // Predicated region
    $region42: #{tpu_custom_call.1} parent=1 // pred_check
      _
    $region43: #{tpu_custom_call.1} parent=1 // pred_check_branch
      %1896 = sbr.rel (0) target = $region45
    $region44: #{tpu_custom_call.1} parent=1 // pred_region
      %1897 = dma.done [#allocation10], 1024
    $region45: #{tpu_custom_call.1} parent=1 // pred_fallthru
      _
    %1898 = vsyncpa [#allocation3], 1
    %1899 = vsyncpa [#allocation6], 1
    %1900 = vsyncpa [#allocation4], 1
    %1901 = vsyncpa [#allocation10], 1

</llo_original>
